<compile_context>
chip_gen: v7x
topology: tpu7x:2x2x1
jax: 0.10.0
libtpu: 0.0.40
codegen_flags: <defaults>
</compile_context>

<pallas_src>
import jax
import jax.numpy as jnp
from jax.experimental import pallas as pl
from jax.experimental.pallas import tpu as pltpu

# ----------------------------- config (small, synthetic) --------------------
B = 2          # batch
S = 8          # sequence length
H = 32         # hidden size
NH = 4         # attention heads
HD = H // NH   # head dim = 8
I = 64         # MLP intermediate size
BS = B * S     # rows after folding batch into sequence
EPS = 1e-6
ROPE_THETA = 10000.0


# ----------------------------- kernel ---------------------------------------
def _rms_norm2d(x, w):
    # x: (BS, H), w: (1, H)
    var = jnp.mean(x * x, axis=-1, keepdims=True)
    return x * jax.lax.rsqrt(var + EPS) * w


def llama_layer_kernel(x_ref, ln1_ref, wqkv_ref, wo_ref, ln2_ref, wgu_ref,
                       wd_ref, cos_ref, sin_ref, bias_ref, o_ref):
    x = x_ref[...]                      # (BS, H)  f32
    cos = cos_ref[...]                  # (BS, HD) pre-tiled over batch
    sin = sin_ref[...]                  # (BS, HD)
    bias = bias_ref[...]                # (BS, BS) additive causal/batch mask
    wo = wo_ref[...]                    # (H, H)

    # ---------------- self-attention block ----------------
    xn = _rms_norm2d(x, ln1_ref[...])                                   # (BS, H)
    # one fused projection: [q*scale | k | v | rot_half(q)*scale | rot_half(k)]
    qkv = jnp.dot(xn, wqkv_ref[...], preferred_element_type=jnp.float32)  # (BS, 5H)

    attn = None
    for h in range(NH):                 # statically unrolled, 2-D slices only
        lo = h * HD
        q_h = qkv[:, lo:lo + HD]                      # (BS, HD)
        k_h = qkv[:, H + lo:H + lo + HD]
        v_h = qkv[:, 2 * H + lo:2 * H + lo + HD]
        qr_h = qkv[:, 3 * H + lo:3 * H + lo + HD]     # rotate_half(q_h) (pre-baked)
        kr_h = qkv[:, 4 * H + lo:4 * H + lo + HD]     # rotate_half(k_h)

        # RoPE (1/sqrt(HD) already folded into the q weights)
        q_h = q_h * cos + qr_h * sin
        k_h = k_h * cos + kr_h * sin

        # scores[i, j] = q_h[i, :] . k_h[j, :]  (contraction on last dims)
        s = jax.lax.dot_general(q_h, k_h, (((1,), (1,)), ((), ())),
                                preferred_element_type=jnp.float32) + bias  # (BS, BS)

        # stable softmax over keys
        m = jnp.max(s, axis=-1, keepdims=True)
        p = jnp.exp(s - m)
        l = jnp.sum(p, axis=-1, keepdims=True)
        ctx = jnp.dot(p, v_h, preferred_element_type=jnp.float32)            # (BS, HD)
        ctx = ctx * pl.reciprocal(l, approx=False)

        # fold directly into the output projection (no lane concatenation)
        part = jnp.dot(ctx, wo[lo:lo + HD, :],
                       preferred_element_type=jnp.float32)                   # (BS, H)
        attn = part if attn is None else attn + part

    h1 = x + attn

    # ---------------- MLP block ----------------
    hn = _rms_norm2d(h1, ln2_ref[...])
    gu = jnp.dot(hn, wgu_ref[...], preferred_element_type=jnp.float32)       # (BS, 2I)
    gate = gu[:, :I]
    up = gu[:, I:]
    act = gate * jax.nn.sigmoid(gate) * up                                   # SiLU(gate)*up
    down = jnp.dot(act, wd_ref[...], preferred_element_type=jnp.float32)     # (BS, H)

    o_ref[...] = h1 + down


# ----------------------------- wrapper ---------------------------------------
def _rotate_half_cols(w):
    """Apply rotate_half to the per-head output columns of a (H, H) weight.

    Guarantees  xn @ rot_cols(w) == rotate_half(xn @ w)  per head.
    """
    w3 = w.reshape(H, NH, HD)
    w_rot = jnp.concatenate([-w3[..., HD // 2:], w3[..., :HD // 2]], axis=-1)
    return w_rot.reshape(H, H)


def llama_layer_pallas(x, params, cos, sin):
    """x: (B, S, H) f32. params: dict of weights stored as (in, out) = W.T."""
    scale = 1.0 / (HD ** 0.5)

    # Fused projection weights (wrapper-side precompute, semantics unchanged).
    wq_s = params['wq'] * scale
    wqkv = jnp.concatenate(
        [wq_s, params['wk'], params['wv'],
         _rotate_half_cols(wq_s), _rotate_half_cols(params['wk'])], axis=1)   # (H, 5H)
    wgu = jnp.concatenate([params['wg'], params['wu']], axis=1)               # (H, 2I)

    # RoPE tables tiled over batch (positions 0..S-1 per batch element).
    cos_bs = jnp.tile(cos, (B, 1)).astype(jnp.float32)                        # (BS, HD)
    sin_bs = jnp.tile(sin, (B, 1)).astype(jnp.float32)

    # Additive mask: block-diagonal (keeps batches separate) and causal.
    idx = jnp.arange(BS)
    bi = idx // S
    pi = idx % S
    allowed = (bi[:, None] == bi[None, :]) & (pi[None, :] <= pi[:, None])
    bias = jnp.where(allowed, 0.0, -1e30).astype(jnp.float32)                 # (BS, BS)

    x2d = x.reshape(BS, H)

    vmem = pl.BlockSpec(memory_space=pltpu.MemorySpace.VMEM)
    out = pl.pallas_call(
        llama_layer_kernel,
        out_shape=jax.ShapeDtypeStruct((BS, H), jnp.float32),
        in_specs=[vmem] * 10,
        out_specs=vmem,
    )(x2d, params['ln1'], wqkv, params['wo'], params['ln2'], wgu,
      params['wd'], cos_bs, sin_bs, bias)

    return out.reshape(B, S, H)


# ----------------------------- pure-JAX reference ----------------------------
def _rotate_half(x):
    x1 = x[..., : HD // 2]
    x2 = x[..., HD // 2:]
    return jnp.concatenate([-x2, x1], axis=-1)


def _rms_norm(x, w):
    var = jnp.mean(x * x, axis=-1, keepdims=True)
    return x * jax.lax.rsqrt(var + EPS) * w


def llama_layer_ref(x, params, cos, sin):
    def one(xb):
        ln1_w = params['ln1'][0]
        ln2_w = params['ln2'][0]
        residual = xb
        xn = _rms_norm(xb, ln1_w)
        q = (xn @ params['wq']).reshape(S, NH, HD)
        k = (xn @ params['wk']).reshape(S, NH, HD)
        v = (xn @ params['wv']).reshape(S, NH, HD)
        cb, sb = cos[:, None, :], sin[:, None, :]
        q = q * cb + _rotate_half(q) * sb
        k = k * cb + _rotate_half(k) * sb
        scores = jnp.einsum('qhd,khd->hqk', q, k) / jnp.sqrt(jnp.float32(HD))
        mask = jnp.tril(jnp.ones((S, S), bool))[None]
        scores = jnp.where(mask, scores, -1e30)
        p = jax.nn.softmax(scores, axis=-1)
        ctx = jnp.einsum('hqk,khd->qhd', p, v).reshape(S, H)
        h = residual + ctx @ params['wo']
        hn = _rms_norm(h, ln2_w)
        gate = hn @ params['wg']
        up = hn @ params['wu']
        down = (gate * jax.nn.sigmoid(gate) * up) @ params['wd']
        return h + down
    return jax.vmap(one)(x)


if __name__ == "__main__":
    key = jax.random.PRNGKey(0)
    keys = jax.random.split(key, 10)
    std = 0.02

    # Parameters (deterministic init). Linear weights stored as (in, out) = W.T
    params = {
        'ln1': jnp.ones((1, H), jnp.float32),
        'ln2': jnp.ones((1, H), jnp.float32),
        'wq': std * jax.random.normal(keys[0], (H, H), jnp.float32),
        'wk': std * jax.random.normal(keys[1], (H, H), jnp.float32),
        'wv': std * jax.random.normal(keys[2], (H, H), jnp.float32),
        'wo': std * jax.random.normal(keys[3], (H, H), jnp.float32),
        'wg': std * jax.random.normal(keys[4], (H, I), jnp.float32),
        'wu': std * jax.random.normal(keys[5], (H, I), jnp.float32),
        'wd': std * jax.random.normal(keys[6], (I, H), jnp.float32),
    }

    # RoPE tables (position_ids = 0..S-1, the HF default when None)
    inv_freq = 1.0 / (ROPE_THETA ** (jnp.arange(0, HD, 2, dtype=jnp.float32) / HD))
    pos = jnp.arange(S, dtype=jnp.float32)
    freqs = pos[:, None] * inv_freq[None, :]           # (S, HD/2)
    emb = jnp.concatenate([freqs, freqs], axis=-1)     # (S, HD)
    cos, sin = jnp.cos(emb), jnp.sin(emb)

    x = jax.random.normal(keys[7], (B, S, H), jnp.float32)

    out = llama_layer_pallas(x, params, cos, sin)
    out = jax.block_until_ready(out)

    ref = llama_layer_ref(x, params, cos, sin)
    assert out.shape == (B, S, H)
    assert jnp.allclose(out, ref, atol=1e-4, rtol=1e-4), "mismatch vs. JAX reference"

    print("KERNEL_OK")
</pallas_src>

<mosaic_0001>
module attributes {stable_mosaic.version = 11 : i64} {
  func.func @llama_layer_kernel(%arg0: memref<16x32xf32, #tpu.memory_space<vmem>>, %arg1: memref<1x32xf32, #tpu.memory_space<vmem>>, %arg2: memref<32x160xf32, #tpu.memory_space<vmem>>, %arg3: memref<32x32xf32, #tpu.memory_space<vmem>>, %arg4: memref<1x32xf32, #tpu.memory_space<vmem>>, %arg5: memref<32x128xf32, #tpu.memory_space<vmem>>, %arg6: memref<64x32xf32, #tpu.memory_space<vmem>>, %arg7: memref<16x8xf32, #tpu.memory_space<vmem>>, %arg8: memref<16x8xf32, #tpu.memory_space<vmem>>, %arg9: memref<16x16xf32, #tpu.memory_space<vmem>>, %arg10: memref<16x32xf32, #tpu.memory_space<vmem>>) attributes {dimension_semantics = [], scalar_prefetch = 0 : i64, scratch_operands = 0 : i64, tpu.core_type = #tpu.core_type<tc>} {
    %c0 = arith.constant 0 : index
    %c0_0 = arith.constant 0 : index
    %0 = vector.load %arg0[%c0, %c0_0] : memref<16x32xf32, #tpu.memory_space<vmem>>, vector<16x32xf32>
    %c0_1 = arith.constant 0 : index
    %c0_2 = arith.constant 0 : index
    %1 = vector.load %arg7[%c0_1, %c0_2] : memref<16x8xf32, #tpu.memory_space<vmem>>, vector<16x8xf32>
    %c0_3 = arith.constant 0 : index
    %c0_4 = arith.constant 0 : index
    %2 = vector.load %arg8[%c0_3, %c0_4] : memref<16x8xf32, #tpu.memory_space<vmem>>, vector<16x8xf32>
    %c0_5 = arith.constant 0 : index
    %c0_6 = arith.constant 0 : index
    %3 = vector.load %arg9[%c0_5, %c0_6] : memref<16x16xf32, #tpu.memory_space<vmem>>, vector<16x16xf32>
    %c0_7 = arith.constant 0 : index
    %c0_8 = arith.constant 0 : index
    %4 = vector.load %arg3[%c0_7, %c0_8] : memref<32x32xf32, #tpu.memory_space<vmem>>, vector<32x32xf32>
    %c0_9 = arith.constant 0 : index
    %c0_10 = arith.constant 0 : index
    %5 = vector.load %arg1[%c0_9, %c0_10] : memref<1x32xf32, #tpu.memory_space<vmem>>, vector<1x32xf32>
    %6 = arith.mulf %0, %0 : vector<16x32xf32>
    %cst = arith.constant dense<0.000000e+00> : vector<16xf32>
    %7 = vector.multi_reduction <add>, %6, %cst [1] : vector<16x32xf32> to vector<16xf32>
    %8 = vector.shape_cast %7 : vector<16xf32> to vector<16x1xf32>
    %cst_11 = arith.constant 3.200000e+01 : f32
    %9 = vector.broadcast %cst_11 : f32 to vector<16x1xf32>
    %10 = arith.divf %8, %9 : vector<16x1xf32>
    %cst_12 = arith.constant 9.99999997E-7 : f32
    %11 = vector.broadcast %cst_12 : f32 to vector<16x1xf32>
    %12 = arith.addf %10, %11 : vector<16x1xf32>
    %13 = math.rsqrt %12 : vector<16x1xf32>
    %14 = vector.broadcast %13 : vector<16x1xf32> to vector<16x32xf32>
    %15 = arith.mulf %0, %14 : vector<16x32xf32>
    %16 = vector.broadcast %5 : vector<1x32xf32> to vector<16x32xf32>
    %17 = arith.mulf %15, %16 : vector<16x32xf32>
    %c0_13 = arith.constant 0 : index
    %c0_14 = arith.constant 0 : index
    %18 = vector.load %arg2[%c0_13, %c0_14] : memref<32x160xf32, #tpu.memory_space<vmem>>, vector<32x160xf32>
    %cst_15 = arith.constant dense<0.000000e+00> : vector<16x160xf32>
    %19 = tpu.matmul %17, %18, %cst_15 {dimension_numbers = #tpu.dot_dimension_numbers<[1], [0], [0], [1], [0, 0, 1, 1], [], []>} : vector<16x32xf32>, vector<32x160xf32>, vector<16x160xf32> -> vector<16x160xf32>
    %20 = vector.extract_strided_slice %19 {offsets = [0, 0], sizes = [16, 8], strides = [1, 1]} : vector<16x160xf32> to vector<16x8xf32>
    %21 = vector.extract_strided_slice %19 {offsets = [0, 32], sizes = [16, 8], strides = [1, 1]} : vector<16x160xf32> to vector<16x8xf32>
    %22 = vector.extract_strided_slice %19 {offsets = [0, 64], sizes = [16, 8], strides = [1, 1]} : vector<16x160xf32> to vector<16x8xf32>
    %23 = vector.extract_strided_slice %19 {offsets = [0, 96], sizes = [16, 8], strides = [1, 1]} : vector<16x160xf32> to vector<16x8xf32>
    %24 = vector.extract_strided_slice %19 {offsets = [0, 128], sizes = [16, 8], strides = [1, 1]} : vector<16x160xf32> to vector<16x8xf32>
    %25 = arith.mulf %20, %1 : vector<16x8xf32>
    %26 = arith.mulf %23, %2 : vector<16x8xf32>
    %27 = arith.addf %25, %26 : vector<16x8xf32>
    %28 = arith.mulf %21, %1 : vector<16x8xf32>
    %29 = arith.mulf %24, %2 : vector<16x8xf32>
    %30 = arith.addf %28, %29 : vector<16x8xf32>
    %cst_16 = arith.constant dense<0.000000e+00> : vector<16x16xf32>
    %31 = tpu.matmul %27, %30, %cst_16 {dimension_numbers = #tpu.dot_dimension_numbers<[1], [1], [0], [0], [0, 0, 1, 0], [], []>} : vector<16x8xf32>, vector<16x8xf32>, vector<16x16xf32> -> vector<16x16xf32>
    %32 = arith.addf %31, %3 : vector<16x16xf32>
    %cst_17 = arith.constant dense<0xFF800000> : vector<16xf32>
    %33 = vector.multi_reduction <maximumf>, %32, %cst_17 [1] : vector<16x16xf32> to vector<16xf32>
    %34 = vector.shape_cast %33 : vector<16xf32> to vector<16x1xf32>
    %35 = vector.broadcast %34 : vector<16x1xf32> to vector<16x16xf32>
    %36 = arith.subf %32, %35 : vector<16x16xf32>
    %37 = math.exp %36 : vector<16x16xf32>
    %cst_18 = arith.constant dense<0.000000e+00> : vector<16xf32>
    %38 = vector.multi_reduction <add>, %37, %cst_18 [1] : vector<16x16xf32> to vector<16xf32>
    %39 = vector.shape_cast %38 : vector<16xf32> to vector<16x1xf32>
    %cst_19 = arith.constant dense<0.000000e+00> : vector<16x8xf32>
    %40 = tpu.matmul %37, %22, %cst_19 {dimension_numbers = #tpu.dot_dimension_numbers<[1], [0], [0], [1], [0, 0, 1, 1], [], []>} : vector<16x16xf32>, vector<16x8xf32>, vector<16x8xf32> -> vector<16x8xf32>
    %41 = tpu.reciprocal %39 : vector<16x1xf32> -> vector<16x1xf32>
    %42 = vector.broadcast %41 : vector<16x1xf32> to vector<16x8xf32>
    %43 = arith.mulf %40, %42 : vector<16x8xf32>
    %44 = vector.extract_strided_slice %4 {offsets = [0, 0], sizes = [8, 32], strides = [1, 1]} : vector<32x32xf32> to vector<8x32xf32>
    %cst_20 = arith.constant dense<0.000000e+00> : vector<16x32xf32>
    %45 = tpu.matmul %43, %44, %cst_20 {dimension_numbers = #tpu.dot_dimension_numbers<[1], [0], [0], [1], [0, 0, 1, 1], [], []>} : vector<16x8xf32>, vector<8x32xf32>, vector<16x32xf32> -> vector<16x32xf32>
    %46 = vector.extract_strided_slice %19 {offsets = [0, 8], sizes = [16, 8], strides = [1, 1]} : vector<16x160xf32> to vector<16x8xf32>
    %47 = vector.extract_strided_slice %19 {offsets = [0, 40], sizes = [16, 8], strides = [1, 1]} : vector<16x160xf32> to vector<16x8xf32>
    %48 = vector.extract_strided_slice %19 {offsets = [0, 72], sizes = [16, 8], strides = [1, 1]} : vector<16x160xf32> to vector<16x8xf32>
    %49 = vector.extract_strided_slice %19 {offsets = [0, 104], sizes = [16, 8], strides = [1, 1]} : vector<16x160xf32> to vector<16x8xf32>
    %50 = vector.extract_strided_slice %19 {offsets = [0, 136], sizes = [16, 8], strides = [1, 1]} : vector<16x160xf32> to vector<16x8xf32>
    %51 = arith.mulf %46, %1 : vector<16x8xf32>
    %52 = arith.mulf %49, %2 : vector<16x8xf32>
    %53 = arith.addf %51, %52 : vector<16x8xf32>
    %54 = arith.mulf %47, %1 : vector<16x8xf32>
    %55 = arith.mulf %50, %2 : vector<16x8xf32>
    %56 = arith.addf %54, %55 : vector<16x8xf32>
    %cst_21 = arith.constant dense<0.000000e+00> : vector<16x16xf32>
    %57 = tpu.matmul %53, %56, %cst_21 {dimension_numbers = #tpu.dot_dimension_numbers<[1], [1], [0], [0], [0, 0, 1, 0], [], []>} : vector<16x8xf32>, vector<16x8xf32>, vector<16x16xf32> -> vector<16x16xf32>
    %58 = arith.addf %57, %3 : vector<16x16xf32>
    %cst_22 = arith.constant dense<0xFF800000> : vector<16xf32>
    %59 = vector.multi_reduction <maximumf>, %58, %cst_22 [1] : vector<16x16xf32> to vector<16xf32>
    %60 = vector.shape_cast %59 : vector<16xf32> to vector<16x1xf32>
    %61 = vector.broadcast %60 : vector<16x1xf32> to vector<16x16xf32>
    %62 = arith.subf %58, %61 : vector<16x16xf32>
    %63 = math.exp %62 : vector<16x16xf32>
    %cst_23 = arith.constant dense<0.000000e+00> : vector<16xf32>
    %64 = vector.multi_reduction <add>, %63, %cst_23 [1] : vector<16x16xf32> to vector<16xf32>
    %65 = vector.shape_cast %64 : vector<16xf32> to vector<16x1xf32>
    %cst_24 = arith.constant dense<0.000000e+00> : vector<16x8xf32>
    %66 = tpu.matmul %63, %48, %cst_24 {dimension_numbers = #tpu.dot_dimension_numbers<[1], [0], [0], [1], [0, 0, 1, 1], [], []>} : vector<16x16xf32>, vector<16x8xf32>, vector<16x8xf32> -> vector<16x8xf32>
    %67 = tpu.reciprocal %65 : vector<16x1xf32> -> vector<16x1xf32>
    %68 = vector.broadcast %67 : vector<16x1xf32> to vector<16x8xf32>
    %69 = arith.mulf %66, %68 : vector<16x8xf32>
    %70 = vector.extract_strided_slice %4 {offsets = [8, 0], sizes = [8, 32], strides = [1, 1]} : vector<32x32xf32> to vector<8x32xf32>
    %cst_25 = arith.constant dense<0.000000e+00> : vector<16x32xf32>
    %71 = tpu.matmul %69, %70, %cst_25 {dimension_numbers = #tpu.dot_dimension_numbers<[1], [0], [0], [1], [0, 0, 1, 1], [], []>} : vector<16x8xf32>, vector<8x32xf32>, vector<16x32xf32> -> vector<16x32xf32>
    %72 = arith.addf %45, %71 : vector<16x32xf32>
    %73 = vector.extract_strided_slice %19 {offsets = [0, 16], sizes = [16, 8], strides = [1, 1]} : vector<16x160xf32> to vector<16x8xf32>
    %74 = vector.extract_strided_slice %19 {offsets = [0, 48], sizes = [16, 8], strides = [1, 1]} : vector<16x160xf32> to vector<16x8xf32>
    %75 = vector.extract_strided_slice %19 {offsets = [0, 80], sizes = [16, 8], strides = [1, 1]} : vector<16x160xf32> to vector<16x8xf32>
    %76 = vector.extract_strided_slice %19 {offsets = [0, 112], sizes = [16, 8], strides = [1, 1]} : vector<16x160xf32> to vector<16x8xf32>
    %77 = vector.extract_strided_slice %19 {offsets = [0, 144], sizes = [16, 8], strides = [1, 1]} : vector<16x160xf32> to vector<16x8xf32>
    %78 = arith.mulf %73, %1 : vector<16x8xf32>
    %79 = arith.mulf %76, %2 : vector<16x8xf32>
    %80 = arith.addf %78, %79 : vector<16x8xf32>
    %81 = arith.mulf %74, %1 : vector<16x8xf32>
    %82 = arith.mulf %77, %2 : vector<16x8xf32>
    %83 = arith.addf %81, %82 : vector<16x8xf32>
    %cst_26 = arith.constant dense<0.000000e+00> : vector<16x16xf32>
    %84 = tpu.matmul %80, %83, %cst_26 {dimension_numbers = #tpu.dot_dimension_numbers<[1], [1], [0], [0], [0, 0, 1, 0], [], []>} : vector<16x8xf32>, vector<16x8xf32>, vector<16x16xf32> -> vector<16x16xf32>
    %85 = arith.addf %84, %3 : vector<16x16xf32>
    %cst_27 = arith.constant dense<0xFF800000> : vector<16xf32>
    %86 = vector.multi_reduction <maximumf>, %85, %cst_27 [1] : vector<16x16xf32> to vector<16xf32>
    %87 = vector.shape_cast %86 : vector<16xf32> to vector<16x1xf32>
    %88 = vector.broadcast %87 : vector<16x1xf32> to vector<16x16xf32>
    %89 = arith.subf %85, %88 : vector<16x16xf32>
    %90 = math.exp %89 : vector<16x16xf32>
    %cst_28 = arith.constant dense<0.000000e+00> : vector<16xf32>
    %91 = vector.multi_reduction <add>, %90, %cst_28 [1] : vector<16x16xf32> to vector<16xf32>
    %92 = vector.shape_cast %91 : vector<16xf32> to vector<16x1xf32>
    %cst_29 = arith.constant dense<0.000000e+00> : vector<16x8xf32>
    %93 = tpu.matmul %90, %75, %cst_29 {dimension_numbers = #tpu.dot_dimension_numbers<[1], [0], [0], [1], [0, 0, 1, 1], [], []>} : vector<16x16xf32>, vector<16x8xf32>, vector<16x8xf32> -> vector<16x8xf32>
    %94 = tpu.reciprocal %92 : vector<16x1xf32> -> vector<16x1xf32>
    %95 = vector.broadcast %94 : vector<16x1xf32> to vector<16x8xf32>
    %96 = arith.mulf %93, %95 : vector<16x8xf32>
    %97 = vector.extract_strided_slice %4 {offsets = [16, 0], sizes = [8, 32], strides = [1, 1]} : vector<32x32xf32> to vector<8x32xf32>
    %cst_30 = arith.constant dense<0.000000e+00> : vector<16x32xf32>
    %98 = tpu.matmul %96, %97, %cst_30 {dimension_numbers = #tpu.dot_dimension_numbers<[1], [0], [0], [1], [0, 0, 1, 1], [], []>} : vector<16x8xf32>, vector<8x32xf32>, vector<16x32xf32> -> vector<16x32xf32>
    %99 = arith.addf %72, %98 : vector<16x32xf32>
    %100 = vector.extract_strided_slice %19 {offsets = [0, 24], sizes = [16, 8], strides = [1, 1]} : vector<16x160xf32> to vector<16x8xf32>
    %101 = vector.extract_strided_slice %19 {offsets = [0, 56], sizes = [16, 8], strides = [1, 1]} : vector<16x160xf32> to vector<16x8xf32>
    %102 = vector.extract_strided_slice %19 {offsets = [0, 88], sizes = [16, 8], strides = [1, 1]} : vector<16x160xf32> to vector<16x8xf32>
    %103 = vector.extract_strided_slice %19 {offsets = [0, 120], sizes = [16, 8], strides = [1, 1]} : vector<16x160xf32> to vector<16x8xf32>
    %104 = vector.extract_strided_slice %19 {offsets = [0, 152], sizes = [16, 8], strides = [1, 1]} : vector<16x160xf32> to vector<16x8xf32>
    %105 = arith.mulf %100, %1 : vector<16x8xf32>
    %106 = arith.mulf %103, %2 : vector<16x8xf32>
    %107 = arith.addf %105, %106 : vector<16x8xf32>
    %108 = arith.mulf %101, %1 : vector<16x8xf32>
    %109 = arith.mulf %104, %2 : vector<16x8xf32>
    %110 = arith.addf %108, %109 : vector<16x8xf32>
    %cst_31 = arith.constant dense<0.000000e+00> : vector<16x16xf32>
    %111 = tpu.matmul %107, %110, %cst_31 {dimension_numbers = #tpu.dot_dimension_numbers<[1], [1], [0], [0], [0, 0, 1, 0], [], []>} : vector<16x8xf32>, vector<16x8xf32>, vector<16x16xf32> -> vector<16x16xf32>
    %112 = arith.addf %111, %3 : vector<16x16xf32>
    %cst_32 = arith.constant dense<0xFF800000> : vector<16xf32>
    %113 = vector.multi_reduction <maximumf>, %112, %cst_32 [1] : vector<16x16xf32> to vector<16xf32>
    %114 = vector.shape_cast %113 : vector<16xf32> to vector<16x1xf32>
    %115 = vector.broadcast %114 : vector<16x1xf32> to vector<16x16xf32>
    %116 = arith.subf %112, %115 : vector<16x16xf32>
    %117 = math.exp %116 : vector<16x16xf32>
    %cst_33 = arith.constant dense<0.000000e+00> : vector<16xf32>
    %118 = vector.multi_reduction <add>, %117, %cst_33 [1] : vector<16x16xf32> to vector<16xf32>
    %119 = vector.shape_cast %118 : vector<16xf32> to vector<16x1xf32>
    %cst_34 = arith.constant dense<0.000000e+00> : vector<16x8xf32>
    %120 = tpu.matmul %117, %102, %cst_34 {dimension_numbers = #tpu.dot_dimension_numbers<[1], [0], [0], [1], [0, 0, 1, 1], [], []>} : vector<16x16xf32>, vector<16x8xf32>, vector<16x8xf32> -> vector<16x8xf32>
    %121 = tpu.reciprocal %119 : vector<16x1xf32> -> vector<16x1xf32>
    %122 = vector.broadcast %121 : vector<16x1xf32> to vector<16x8xf32>
    %123 = arith.mulf %120, %122 : vector<16x8xf32>
    %124 = vector.extract_strided_slice %4 {offsets = [24, 0], sizes = [8, 32], strides = [1, 1]} : vector<32x32xf32> to vector<8x32xf32>
    %cst_35 = arith.constant dense<0.000000e+00> : vector<16x32xf32>
    %125 = tpu.matmul %123, %124, %cst_35 {dimension_numbers = #tpu.dot_dimension_numbers<[1], [0], [0], [1], [0, 0, 1, 1], [], []>} : vector<16x8xf32>, vector<8x32xf32>, vector<16x32xf32> -> vector<16x32xf32>
    %126 = arith.addf %99, %125 : vector<16x32xf32>
    %127 = arith.addf %0, %126 : vector<16x32xf32>
    %c0_36 = arith.constant 0 : index
    %c0_37 = arith.constant 0 : index
    %128 = vector.load %arg4[%c0_36, %c0_37] : memref<1x32xf32, #tpu.memory_space<vmem>>, vector<1x32xf32>
    %129 = arith.mulf %127, %127 : vector<16x32xf32>
    %cst_38 = arith.constant dense<0.000000e+00> : vector<16xf32>
    %130 = vector.multi_reduction <add>, %129, %cst_38 [1] : vector<16x32xf32> to vector<16xf32>
    %131 = vector.shape_cast %130 : vector<16xf32> to vector<16x1xf32>
    %cst_39 = arith.constant 3.200000e+01 : f32
    %132 = vector.broadcast %cst_39 : f32 to vector<16x1xf32>
    %133 = arith.divf %131, %132 : vector<16x1xf32>
    %cst_40 = arith.constant 9.99999997E-7 : f32
    %134 = vector.broadcast %cst_40 : f32 to vector<16x1xf32>
    %135 = arith.addf %133, %134 : vector<16x1xf32>
    %136 = math.rsqrt %135 : vector<16x1xf32>
    %137 = vector.broadcast %136 : vector<16x1xf32> to vector<16x32xf32>
    %138 = arith.mulf %127, %137 : vector<16x32xf32>
    %139 = vector.broadcast %128 : vector<1x32xf32> to vector<16x32xf32>
    %140 = arith.mulf %138, %139 : vector<16x32xf32>
    %c0_41 = arith.constant 0 : index
    %c0_42 = arith.constant 0 : index
    %141 = vector.load %arg5[%c0_41, %c0_42] : memref<32x128xf32, #tpu.memory_space<vmem>>, vector<32x128xf32>
    %cst_43 = arith.constant dense<0.000000e+00> : vector<16x128xf32>
    %142 = tpu.matmul %140, %141, %cst_43 {dimension_numbers = #tpu.dot_dimension_numbers<[1], [0], [0], [1], [0, 0, 1, 1], [], []>} : vector<16x32xf32>, vector<32x128xf32>, vector<16x128xf32> -> vector<16x128xf32>
    %143 = vector.extract_strided_slice %142 {offsets = [0, 0], sizes = [16, 64], strides = [1, 1]} : vector<16x128xf32> to vector<16x64xf32>
    %144 = vector.extract_strided_slice %142 {offsets = [0, 64], sizes = [16, 64], strides = [1, 1]} : vector<16x128xf32> to vector<16x64xf32>
    %145 = arith.negf %143 : vector<16x64xf32>
    %146 = math.exp %145 : vector<16x64xf32>
    %cst_44 = arith.constant 1.000000e+00 : f32
    %147 = vector.broadcast %cst_44 : f32 to vector<16x64xf32>
    %148 = arith.addf %147, %146 : vector<16x64xf32>
    %149 = arith.divf %147, %148 : vector<16x64xf32>
    %150 = arith.mulf %143, %149 : vector<16x64xf32>
    %151 = arith.mulf %150, %144 : vector<16x64xf32>
    %c0_45 = arith.constant 0 : index
    %c0_46 = arith.constant 0 : index
    %152 = vector.load %arg6[%c0_45, %c0_46] : memref<64x32xf32, #tpu.memory_space<vmem>>, vector<64x32xf32>
    %cst_47 = arith.constant dense<0.000000e+00> : vector<16x32xf32>
    %153 = tpu.matmul %151, %152, %cst_47 {dimension_numbers = #tpu.dot_dimension_numbers<[1], [0], [0], [1], [0, 0, 1, 1], [], []>} : vector<16x64xf32>, vector<64x32xf32>, vector<16x32xf32> -> vector<16x32xf32>
    %154 = arith.addf %127, %153 : vector<16x32xf32>
    %c0_48 = arith.constant 0 : index
    %c0_49 = arith.constant 0 : index
    %155 = vector.load %arg10[%c0_48, %c0_49] : memref<16x32xf32, #tpu.memory_space<vmem>>, vector<16x32xf32>
    tpu.vector_store %arg10[%c0_48, %c0_49], %154 {strides = array<i32>} : memref<16x32xf32, #tpu.memory_space<vmem>>, vector<16x32xf32>,
    return
  }
}

</mosaic_0001>

<llo_original>
// kernel: tpu_custom_call.1
$region0: #{tpu_custom_call.1}
  #allocation0 [shape = 'u32[]', space=smem, size = 0x4, offset = 0x4, fixed_abs, tag = 'smem constant byte address 0x4 - core index']
  #allocation1 [shape = 'u32[144,128]{1,0:T(1,128)}', space=vmem, size = 0x12000, scoped, tag = 'internal scratch']
  %s0 = inlined_call_operand.hbm [shape: f32[16,32], index: 0, kind: input, shape index: {}]
  %s1 = inlined_call_operand.vmem [shape: f32[1,32], index: 1, kind: input, shape index: {}]
  %s2 = inlined_call_operand.vmem [shape: f32[32,160], index: 2, kind: input, shape index: {}]
  %s3 = inlined_call_operand.vmem [shape: f32[32,32], index: 3, kind: input, shape index: {}]
  %s4 = inlined_call_operand.vmem [shape: f32[1,32], index: 4, kind: input, shape index: {}]
  %s5 = inlined_call_operand.vmem [shape: f32[32,128], index: 5, kind: input, shape index: {}]
  %s6 = inlined_call_operand.vmem [shape: f32[64,32], index: 6, kind: input, shape index: {}]
  %s7 = inlined_call_operand.vmem [shape: f32[16,8], index: 7, kind: input, shape index: {}]
  %s8 = inlined_call_operand.vmem [shape: f32[16,8], index: 8, kind: input, shape index: {}]
  %s9 = inlined_call_operand.vmem [shape: f32[16,16], index: 9, kind: input, shape index: {}]
  %s10 = inlined_call_operand.hbm [shape: f32[16,32], index: 10, kind: output, shape index: {}]
  %s11 = sld [smem:[#allocation0]]
  $region54: #{tpu_custom_call.1} parent=0
    _
  %s13 = ssub.s32 1, %s11
  %s14 = scalar_select 0, %s13, %s11
  $region1: #{tpu_custom_call.1} parent=0
    #allocation2 [shape = 'u8[8192]{0}', space=vmem, size = 0x2000, scoped, tag = 'input window, operand 0, single buffered']
    #allocation3 [shape = 's32[1]{0}', space=sflag, size = 0x4, scoped, tag = 'scoped memory for tpu_custom_call.1']
    #allocation4 [shape = 's32[1]{0}', space=sflag, size = 0x4, scoped, tag = 'scoped memory for tpu_custom_call.1']
    #allocation5 [shape = 'u8[8192]{0}', space=vmem, size = 0x2000, scoped, tag = 'output window, operand 0, single buffered']
    %15 = vsyncpa [#allocation3], 0
    %16 = vsyncpa [#allocation4], 0
    // Predicated region
    $region2: #{tpu_custom_call.1} parent=1 // pred_check
      _
    $region3: #{tpu_custom_call.1} parent=1 // pred_check_branch
      %18 = sbr.rel (0) target = $region5
    $region4: #{tpu_custom_call.1} parent=1 // pred_region
      %s20 = ssub.s32 256, 256
      %21 = vsyncadd [#allocation3], %s20
      %s22 = sshll.u32 [#allocation2], 4
      %s23 = int_to_ptr.vmem [resolvable:$true] %s22
      %28 = dma.hbm_to_vmem [thread:$0]  %s0, 256, %s23, [#allocation3], 128, 128, 8
    $region5: #{tpu_custom_call.1} parent=1 // pred_fallthru
      _
    // Predicated region
    $region6: #{tpu_custom_call.1} parent=1 // pred_check
      _
    $region7: #{tpu_custom_call.1} parent=1 // pred_check_branch
      %30 = sbr.rel (0) target = $region9
    $region8: #{tpu_custom_call.1} parent=1 // pred_region
      _
    $region9: #{tpu_custom_call.1} parent=1 // pred_fallthru
      _
    // Predicated region
    $region10: #{tpu_custom_call.1} parent=1 // pred_check
      _
    $region11: #{tpu_custom_call.1} parent=1 // pred_check_branch
      %32 = sbr.rel (0) target = $region13
    $region12: #{tpu_custom_call.1} parent=1 // pred_region
      _
    $region13: #{tpu_custom_call.1} parent=1 // pred_fallthru
      _
    // Predicated region
    $region14: #{tpu_custom_call.1} parent=1 // pred_check
      _
    $region15: #{tpu_custom_call.1} parent=1 // pred_check_branch
      %34 = sbr.rel (0) target = $region17
    $region16: #{tpu_custom_call.1} parent=1 // pred_region
      _
    $region17: #{tpu_custom_call.1} parent=1 // pred_fallthru
      _
    // Predicated region
    $region18: #{tpu_custom_call.1} parent=1 // pred_check
      _
    $region19: #{tpu_custom_call.1} parent=1 // pred_check_branch
      %36 = sbr.rel (0) target = $region21
    $region20: #{tpu_custom_call.1} parent=1 // pred_region
      _
    $region21: #{tpu_custom_call.1} parent=1 // pred_fallthru
      _
    // Predicated region
    $region22: #{tpu_custom_call.1} parent=1 // pred_check
      _
    $region23: #{tpu_custom_call.1} parent=1 // pred_check_branch
      %38 = sbr.rel (0) target = $region25
    $region24: #{tpu_custom_call.1} parent=1 // pred_region
      _
    $region25: #{tpu_custom_call.1} parent=1 // pred_fallthru
      _
    // Predicated region
    $region26: #{tpu_custom_call.1} parent=1 // pred_check
      _
    $region27: #{tpu_custom_call.1} parent=1 // pred_check_branch
      %40 = sbr.rel (0) target = $region29
    $region28: #{tpu_custom_call.1} parent=1 // pred_region
      _
    $region29: #{tpu_custom_call.1} parent=1 // pred_fallthru
      _
    // Predicated region
    $region30: #{tpu_custom_call.1} parent=1 // pred_check
      _
    $region31: #{tpu_custom_call.1} parent=1 // pred_check_branch
      %42 = sbr.rel (0) target = $region33
    $region32: #{tpu_custom_call.1} parent=1 // pred_region
      _
    $region33: #{tpu_custom_call.1} parent=1 // pred_fallthru
      _
    // Predicated region
    $region34: #{tpu_custom_call.1} parent=1 // pred_check
      _
    $region35: #{tpu_custom_call.1} parent=1 // pred_check_branch
      %44 = sbr.rel (0) target = $region37
    $region36: #{tpu_custom_call.1} parent=1 // pred_region
      _
    $region37: #{tpu_custom_call.1} parent=1 // pred_fallthru
      _
    // Predicated region
    $region38: #{tpu_custom_call.1} parent=1 // pred_check
      _
    $region39: #{tpu_custom_call.1} parent=1 // pred_check_branch
      %46 = sbr.rel (0) target = $region41
    $region40: #{tpu_custom_call.1} parent=1 // pred_region
      _
    $region41: #{tpu_custom_call.1} parent=1 // pred_fallthru
      _
    // Predicated region
    $region42: #{tpu_custom_call.1} parent=1 // pred_check
      _
    $region43: #{tpu_custom_call.1} parent=1 // pred_check_branch
      %48 = sbr.rel (0) target = $region45
    $region44: #{tpu_custom_call.1} parent=1 // pred_region
      %49 = dma.done [#allocation3], 256
    $region45: #{tpu_custom_call.1} parent=1 // pred_fallthru
      _
    %v50 = vld [vmem:[#allocation2] sm:$0xff]
    %v51 = vld [vmem:[#allocation2 + $0x8] sm:$0xff]
    %v52 = vld [vmem:[%s7] sm:$0xff]
    %v53 = vld [vmem:[%s7 + $0x8] sm:$0xff]
    %v54 = vld [vmem:[%s8] sm:$0xff]
    %v55 = vld [vmem:[%s8 + $0x8] sm:$0xff]
    %v56 = vld [vmem:[%s9] sm:$0xff]
    %v57 = vld [vmem:[%s9 + $0x8] sm:$0xff]
    %v58 = vld [vmem:[%s3] sm:$0xff]
    %v59 = vld [vmem:[%s3 + $0x8] sm:$0xff]
    %v60 = vld [vmem:[%s3 + $0x10] sm:$0xff]
    %v61 = vld [vmem:[%s3 + $0x18] sm:$0xff]
    %v62 = vld [vmem:[%s1] sm:$0x1]
    %v63 = vmul.f32 %v50, %v50
    %v64 = vmul.f32 %v51, %v51
    %vm65 = vcmask 261120
    %v66 = vsel %vm65, %v63, 0.0
    %67 = vadd.xlane.f32.xlu0 %v66
    %v68 = vpop.xlane.xlu0 %67
    %v69 = vsel %vm65, %v64, 0.0
    %70 = vadd.xlane.f32.xlu0 %v69
    %v71 = vpop.xlane.xlu0 %70
    %v72 = vrcp.pop 32.0
    %v73 = vmul.f32 %v68, %v72
    %v74 = vmul.f32 %v71, %v72
    %v75 = vadd.f32 %v73, 1e-06
    %v76 = vadd.f32 %v74, 1e-06
    %v77 = vrsqrt.pop %v75
    %v78 = vrsqrt.pop %v76
    %v79 = vmul.f32 %v50, %v77
    %v80 = vmul.f32 %v51, %v78
    %v82 = vlaneseq
    %v83 = vshrl.u32 %v82, 7
    %v84 = vsub.s32 0, %v83
    %v85 = vrot.slane %v62, %v84
    %v87 = vmul.f32 %v79, %v85
    %v88 = vmul.f32 %v80, %v85
    %v89 = vld [vmem:[%s2] sm:$0xff]
    %v90 = vld [vmem:[%s2 + $0x8] sm:$0xff]
    %v91 = vld [vmem:[%s2 + $0x10] sm:$0xff]
    %v92 = vld [vmem:[%s2 + $0x18] sm:$0xff]
    %v93 = vld [vmem:[%s2 + $0x20] sm:$0xff]
    %v94 = vld [vmem:[%s2 + $0x28] sm:$0xff]
    %v95 = vld [vmem:[%s2 + $0x30] sm:$0xff]
    %v96 = vld [vmem:[%s2 + $0x38] sm:$0xff]
    %v98 = vsel %vm65, %v87, 0
    %v101 = vsel %vm65, %v88, 0
    %103 = vmatprep.subr.mxu0 %v90
    %104 = vmatpush1.msra.mxu0 %v89
    %105 = vmatprep.subr.mxu0 %v92
    %106 = vmatpush1.msra.mxu0 %v91
    %107 = vmatprep.subr.mxu0 %v94
    %108 = vmatpush1.msra.mxu0 %v93
    %109 = vmatprep.subr.mxu0 %v96
    %110 = vmatpush1.msra.mxu0 %v95
    %111 = vmatprep.subr.mxu0 0.0
    %112 = vmatpush1.msra.mxu0 0.0
    %113 = vmatprep.subr.mxu0 0.0
    %114 = vmatpush1.msra.mxu0 0.0
    %115 = vmatprep.subr.mxu0 0.0
    %116 = vmatpush1.msra.mxu0 0.0
    %117 = vmatprep.subr.mxu0 0.0
    %118 = vmatpush1.msra.mxu0 0.0
    %119 = vmatprep.subr.mxu0 0.0
    %120 = vmatpush1.msra.mxu0 0.0
    %121 = vmatprep.subr.mxu0 0.0
    %122 = vmatpush1.msra.mxu0 0.0
    %123 = vmatprep.subr.mxu0 0.0
    %124 = vmatpush1.msra.mxu0 0.0
    %125 = vmatprep.subr.mxu0 0.0
    %126 = vmatpush1.msra.mxu0 0.0
    %127 = vmatprep.subr.mxu0 0.0
    %128 = vmatpush1.msra.mxu0 0.0
    %129 = vmatprep.subr.mxu0 0.0
    %130 = vmatpush1.msra.mxu0 0.0
    %131 = vmatprep.subr.mxu0 0.0
    %132 = vmatpush1.msra.mxu0 0.0
    %133 = vmatprep.subr.mxu0 0.0
    %134 = vmatpush1.msra.mxu0 0.0
    %135 = vmatprep.subr.mxu0 0.0
    %136 = vmatpush1.msra.mxu0 0.0
    %137 = vmatprep.subr.mxu0 0.0
    %138 = vmatpush1.msra.mxu0 0.0
    %139 = vmatprep.subr.mxu0 0.0
    %140 = vmatpush1.msra.mxu0 0.0
    %141 = vmatprep.subr.mxu0 0.0
    %142 = vmatpush1.msra.mxu0 0.0
    %143 = vmatprep.subr.mxu0 0.0
    %144 = vmatpush1.msra.mxu0 0.0
    %145 = vmatprep.subr.mxu0 0.0
    %146 = vmatpush1.msra.mxu0 0.0
    %147 = vmatprep.subr.mxu0 0.0
    %148 = vmatpush1.msra.mxu0 0.0
    %149 = vmatprep.subr.mxu0 0.0
    %150 = vmatpush1.msra.mxu0 0.0
    %151 = vmatprep.subr.mxu0 0.0
    %152 = vmatpush1.msra.mxu0 0.0
    %153 = vmatprep.subr.mxu0 0.0
    %154 = vmatpush1.msra.mxu0 0.0
    %155 = vmatprep.subr.mxu0 0.0
    %156 = vmatpush1.msra.mxu0 0.0
    %157 = vmatprep.subr.mxu0 0.0
    %158 = vmatpush1.msra.mxu0 0.0
    %159 = vmatprep.subr.mxu0 0.0
    %160 = vmatpush1.msra.mxu0 0.0
    %161 = vmatprep.subr.mxu0 0.0
    %162 = vmatpush1.msra.mxu0 0.0
    %163 = vmatprep.subr.mxu0 0.0
    %164 = vmatpush1.msra.mxu0 0.0
    %165 = vmatprep.subr.mxu0 0.0
    %166 = vmatpush1.msra.mxu0 0.0
    %167 = vmatprep.mubr.f32.mxu0 0.0
    %168 = vmatmul.mubr.f32.gmra.mrb[0].mxu0 %v98
    %v169 = vpop.f32.mrb[0].mxu0
    %v170 = vadd.f32 0.0, %v169
    %v171 = vpop.f32.mrb[0].mxu0
    %v172 = vadd.f32 0.0, %v171
    %173 = vmatprep.mubr.f32.mxu0 0.0
    %174 = vmatmul.mubr.f32.gmra.mrb[0].mxu0 %v101
    %v175 = vpop.f32.mrb[0].mxu0
    %v176 = vadd.f32 0.0, %v175
    %v177 = vpop.f32.mrb[0].mxu0
    %v178 = vadd.f32 0.0, %v177
    %179 = vdwg.mxu0
    %v180 = vmul.f32 %v170, %v52
    %v181 = vmul.f32 %v176, %v53
    %184 = vrot.lane.b32.xlu0 %v54, 96
    %v185 = vpop.permute.xlu0 %184
    %186 = vrot.lane.b32.xlu0 %v55, 96
    %v187 = vpop.permute.xlu0 %186
    %v190 = vmul.f32 %v170, %v185
    %v191 = vmul.f32 %v176, %v187
    %194 = vrot.lane.b32.xlu0 %v190, 32
    %v195 = vpop.permute.xlu0 %194
    %196 = vrot.lane.b32.xlu0 %v191, 32
    %v197 = vpop.permute.xlu0 %196
    %v200 = vadd.f32 %v180, %v195
    %v201 = vadd.f32 %v181, %v197
    %204 = vrot.lane.b32.xlu0 %v52, 32
    %v205 = vpop.permute.xlu0 %204
    %206 = vrot.lane.b32.xlu0 %v53, 32
    %v207 = vpop.permute.xlu0 %206
    %v210 = vmul.f32 %v170, %v205
    %v211 = vmul.f32 %v176, %v207
    %v212 = vmul.f32 %v172, %v54
    %v213 = vmul.f32 %v178, %v55
    %216 = vrot.lane.b32.xlu0 %v212, 32
    %v217 = vpop.permute.xlu0 %216
    %218 = vrot.lane.b32.xlu0 %v213, 32
    %v219 = vpop.permute.xlu0 %218
    %v222 = vadd.f32 %v210, %v217
    %v223 = vadd.f32 %v211, %v219
    %226 = vrot.lane.b32.xlu0 %v222, 96
    %v227 = vpop.permute.xlu0 %226
    %228 = vrot.lane.b32.xlu0 %v223, 96
    %v229 = vpop.permute.xlu0 %228
    %vm230 = vcmask 64512
    %v232 = vsel %vm230, %v200, 0
    %v235 = vsel %vm230, %v201, 0
    %v237 = vsel %vm230, %v227, 0
    %v239 = vsel %vm230, %v229, 0
    %241 = vmatprep.subr.mxu0 0.0
    %242 = vmatpush1.xpose.msra.mxu0 %v237
    %243 = vmatprep.subr.mxu0 0.0
    %244 = vmatpush1.xpose.msra.mxu0 %v239
    %245 = vmatprep.subr.mxu0 0.0
    %246 = vmatpush1.xpose.msra.mxu0 0.0
    %247 = vmatprep.subr.mxu0 0.0
    %248 = vmatpush1.xpose.msra.mxu0 0.0
    %249 = vmatprep.subr.mxu0 0.0
    %250 = vmatpush1.xpose.msra.mxu0 0.0
    %251 = vmatprep.subr.mxu0 0.0
    %252 = vmatpush1.xpose.msra.mxu0 0.0
    %253 = vmatprep.subr.mxu0 0.0
    %254 = vmatpush1.xpose.msra.mxu0 0.0
    %255 = vmatprep.subr.mxu0 0.0
    %256 = vmatpush1.xpose.msra.mxu0 0.0
    %257 = vmatprep.subr.mxu0 0.0
    %258 = vmatpush1.xpose.msra.mxu0 0.0
    %259 = vmatprep.subr.mxu0 0.0
    %260 = vmatpush1.xpose.msra.mxu0 0.0
    %261 = vmatprep.subr.mxu0 0.0
    %262 = vmatpush1.xpose.msra.mxu0 0.0
    %263 = vmatprep.subr.mxu0 0.0
    %264 = vmatpush1.xpose.msra.mxu0 0.0
    %265 = vmatprep.subr.mxu0 0.0
    %266 = vmatpush1.xpose.msra.mxu0 0.0
    %267 = vmatprep.subr.mxu0 0.0
    %268 = vmatpush1.xpose.msra.mxu0 0.0
    %269 = vmatprep.subr.mxu0 0.0
    %270 = vmatpush1.xpose.msra.mxu0 0.0
    %271 = vmatprep.subr.mxu0 0.0
    %272 = vmatpush1.xpose.msra.mxu0 0.0
    %273 = vmatprep.subr.mxu0 0.0
    %274 = vmatpush1.xpose.msra.mxu0 0.0
    %275 = vmatprep.subr.mxu0 0.0
    %276 = vmatpush1.xpose.msra.mxu0 0.0
    %277 = vmatprep.subr.mxu0 0.0
    %278 = vmatpush1.xpose.msra.mxu0 0.0
    %279 = vmatprep.subr.mxu0 0.0
    %280 = vmatpush1.xpose.msra.mxu0 0.0
    %281 = vmatprep.subr.mxu0 0.0
    %282 = vmatpush1.xpose.msra.mxu0 0.0
    %283 = vmatprep.subr.mxu0 0.0
    %284 = vmatpush1.xpose.msra.mxu0 0.0
    %285 = vmatprep.subr.mxu0 0.0
    %286 = vmatpush1.xpose.msra.mxu0 0.0
    %287 = vmatprep.subr.mxu0 0.0
    %288 = vmatpush1.xpose.msra.mxu0 0.0
    %289 = vmatprep.subr.mxu0 0.0
    %290 = vmatpush1.xpose.msra.mxu0 0.0
    %291 = vmatprep.subr.mxu0 0.0
    %292 = vmatpush1.xpose.msra.mxu0 0.0
    %293 = vmatprep.subr.mxu0 0.0
    %294 = vmatpush1.xpose.msra.mxu0 0.0
    %295 = vmatprep.subr.mxu0 0.0
    %296 = vmatpush1.xpose.msra.mxu0 0.0
    %297 = vmatprep.subr.mxu0 0.0
    %298 = vmatpush1.xpose.msra.mxu0 0.0
    %299 = vmatprep.subr.mxu0 0.0
    %300 = vmatpush1.xpose.msra.mxu0 0.0
    %301 = vmatprep.subr.mxu0 0.0
    %302 = vmatpush1.xpose.msra.mxu0 0.0
    %303 = vmatprep.subr.mxu0 0.0
    %304 = vmatpush1.xpose.msra.mxu0 0.0
    %305 = vmatprep.mubr.f32.mxu0 0.0
    %306 = vmatmul.mubr.f32.gmra.mrb[0].mxu0 %v232
    %v307 = vpop.f32.mrb[0].mxu0
    %v308 = vadd.f32 %v56, %v307
    %v309 = vpop.f32.mrb[0].mxu0
    %310 = vmatprep.mubr.f32.mxu0 0.0
    %311 = vmatmul.mubr.f32.gmra.mrb[0].mxu0 %v235
    %v312 = vpop.f32.mrb[0].mxu0
    %v313 = vadd.f32 %v57, %v312
    %v314 = vpop.f32.mrb[0].mxu0
    %315 = vdwg.mxu0
    %vm316 = vcmask 130048
    %v317 = vsel %vm316, %v308, -inf
    %318 = vmax.xlane.f32.xlu0 %v317
    %v319 = vpop.xlane.xlu0 %318
    %v320 = vsel %vm316, %v313, -inf
    %321 = vmax.xlane.f32.xlu0 %v320
    %v322 = vpop.xlane.xlu0 %321
    %v323 = vsub.f32 %v308, %v319
    %v324 = vsub.f32 %v313, %v322
    %v325 = vmul.f32 %v323, 1.442695
    %v326 = vpow.pop %v325
    %v327 = vmul.f32 %v324, 1.442695
    %v328 = vpow.pop %v327
    %v329 = vsel %vm316, %v326, 0.0
    %330 = vadd.xlane.f32.xlu0 %v329
    %v331 = vpop.xlane.xlu0 %330
    %v332 = vsel %vm316, %v328, 0.0
    %333 = vadd.xlane.f32.xlu0 %v332
    %v334 = vpop.xlane.xlu0 %333
    %337 = vrot.lane.b32.xlu0 %v170, 64
    %v338 = vpop.permute.xlu0 %337
    %339 = vrot.lane.b32.xlu0 %v176, 64
    %v340 = vpop.permute.xlu0 %339
    %v344 = vsel %vm316, %v326, 0
    %v347 = vsel %vm316, %v328, 0
    %349 = vmatprep.subr.mxu0 0.0
    %350 = vmatpush1.msra.mxu0 %v338
    %351 = vmatprep.subr.mxu0 0.0
    %352 = vmatpush1.msra.mxu0 %v340
    %353 = vmatprep.subr.mxu0 0.0
    %354 = vmatpush1.msra.mxu0 0.0
    %355 = vmatprep.subr.mxu0 0.0
    %356 = vmatpush1.msra.mxu0 0.0
    %357 = vmatprep.subr.mxu0 0.0
    %358 = vmatpush1.msra.mxu0 0.0
    %359 = vmatprep.subr.mxu0 0.0
    %360 = vmatpush1.msra.mxu0 0.0
    %361 = vmatprep.subr.mxu0 0.0
    %362 = vmatpush1.msra.mxu0 0.0
    %363 = vmatprep.subr.mxu0 0.0
    %364 = vmatpush1.msra.mxu0 0.0
    %365 = vmatprep.subr.mxu0 0.0
    %366 = vmatpush1.msra.mxu0 0.0
    %367 = vmatprep.subr.mxu0 0.0
    %368 = vmatpush1.msra.mxu0 0.0
    %369 = vmatprep.subr.mxu0 0.0
    %370 = vmatpush1.msra.mxu0 0.0
    %371 = vmatprep.subr.mxu0 0.0
    %372 = vmatpush1.msra.mxu0 0.0
    %373 = vmatprep.subr.mxu0 0.0
    %374 = vmatpush1.msra.mxu0 0.0
    %375 = vmatprep.subr.mxu0 0.0
    %376 = vmatpush1.msra.mxu0 0.0
    %377 = vmatprep.subr.mxu0 0.0
    %378 = vmatpush1.msra.mxu0 0.0
    %379 = vmatprep.subr.mxu0 0.0
    %380 = vmatpush1.msra.mxu0 0.0
    %381 = vmatprep.subr.mxu0 0.0
    %382 = vmatpush1.msra.mxu0 0.0
    %383 = vmatprep.subr.mxu0 0.0
    %384 = vmatpush1.msra.mxu0 0.0
    %385 = vmatprep.subr.mxu0 0.0
    %386 = vmatpush1.msra.mxu0 0.0
    %387 = vmatprep.subr.mxu0 0.0
    %388 = vmatpush1.msra.mxu0 0.0
    %389 = vmatprep.subr.mxu0 0.0
    %390 = vmatpush1.msra.mxu0 0.0
    %391 = vmatprep.subr.mxu0 0.0
    %392 = vmatpush1.msra.mxu0 0.0
    %393 = vmatprep.subr.mxu0 0.0
    %394 = vmatpush1.msra.mxu0 0.0
    %395 = vmatprep.subr.mxu0 0.0
    %396 = vmatpush1.msra.mxu0 0.0
    %397 = vmatprep.subr.mxu0 0.0
    %398 = vmatpush1.msra.mxu0 0.0
    %399 = vmatprep.subr.mxu0 0.0
    %400 = vmatpush1.msra.mxu0 0.0
    %401 = vmatprep.subr.mxu0 0.0
    %402 = vmatpush1.msra.mxu0 0.0
    %403 = vmatprep.subr.mxu0 0.0
    %404 = vmatpush1.msra.mxu0 0.0
    %405 = vmatprep.subr.mxu0 0.0
    %406 = vmatpush1.msra.mxu0 0.0
    %407 = vmatprep.subr.mxu0 0.0
    %408 = vmatpush1.msra.mxu0 0.0
    %409 = vmatprep.subr.mxu0 0.0
    %410 = vmatpush1.msra.mxu0 0.0
    %411 = vmatprep.subr.mxu0 0.0
    %412 = vmatpush1.msra.mxu0 0.0
    %413 = vmatprep.mubr.f32.mxu0 0.0
    %414 = vmatmul.mubr.f32.gmra.mrb[0].mxu0 %v344
    %v415 = vpop.f32.mrb[0].mxu0
    %v416 = vadd.f32 0.0, %v415
    %v417 = vpop.f32.mrb[0].mxu0
    %418 = vmatprep.mubr.f32.mxu0 0.0
    %419 = vmatmul.mubr.f32.gmra.mrb[0].mxu0 %v347
    %v420 = vpop.f32.mrb[0].mxu0
    %v421 = vadd.f32 0.0, %v420
    %v422 = vpop.f32.mrb[0].mxu0
    %423 = vdwg.mxu0
    %v424 = vrcp.pop %v331
    %v425 = vrcp.pop %v334
    %v426 = vmul.f32 %v416, %v424
    %v427 = vmul.f32 %v421, %v425
    %428 = vrot.lane.b32.xlu0 %v52, 8
    %v429 = vpop.permute.xlu0 %428
    %430 = vrot.lane.b32.xlu0 %v53, 8
    %v431 = vpop.permute.xlu0 %430
    %v434 = vmul.f32 %v170, %v429
    %v435 = vmul.f32 %v176, %v431
    %436 = vrot.lane.b32.xlu0 %v54, 104
    %v437 = vpop.permute.xlu0 %436
    %438 = vrot.lane.b32.xlu0 %v55, 104
    %v439 = vpop.permute.xlu0 %438
    %v442 = vmul.f32 %v170, %v437
    %v443 = vmul.f32 %v176, %v439
    %446 = vrot.lane.b32.xlu0 %v442, 32
    %v447 = vpop.permute.xlu0 %446
    %448 = vrot.lane.b32.xlu0 %v443, 32
    %v449 = vpop.permute.xlu0 %448
    %v452 = vadd.f32 %v434, %v447
    %v453 = vadd.f32 %v435, %v449
    %454 = vrot.lane.b32.xlu0 %v52, 40
    %v455 = vpop.permute.xlu0 %454
    %456 = vrot.lane.b32.xlu0 %v53, 40
    %v457 = vpop.permute.xlu0 %456
    %v460 = vmul.f32 %v170, %v455
    %v461 = vmul.f32 %v176, %v457
    %462 = vrot.lane.b32.xlu0 %v54, 8
    %v463 = vpop.permute.xlu0 %462
    %464 = vrot.lane.b32.xlu0 %v55, 8
    %v465 = vpop.permute.xlu0 %464
    %v468 = vmul.f32 %v172, %v463
    %v469 = vmul.f32 %v178, %v465
    %472 = vrot.lane.b32.xlu0 %v468, 32
    %v473 = vpop.permute.xlu0 %472
    %474 = vrot.lane.b32.xlu0 %v469, 32
    %v475 = vpop.permute.xlu0 %474
    %v478 = vadd.f32 %v460, %v473
    %v479 = vadd.f32 %v461, %v475
    %482 = vrot.lane.b32.xlu0 %v452, 120
    %v483 = vpop.permute.xlu0 %482
    %484 = vrot.lane.b32.xlu0 %v453, 120
    %v485 = vpop.permute.xlu0 %484
    %488 = vrot.lane.b32.xlu0 %v478, 88
    %v489 = vpop.permute.xlu0 %488
    %490 = vrot.lane.b32.xlu0 %v479, 88
    %v491 = vpop.permute.xlu0 %490
    %v492 = vsel %vm230, %v483, 0
    %v494 = vsel %vm230, %v485, 0
    %v496 = vsel %vm230, %v489, 0
    %v498 = vsel %vm230, %v491, 0
    %500 = vmatprep.subr.mxu0 0.0
    %501 = vmatpush1.xpose.msra.mxu0 %v496
    %502 = vmatprep.subr.mxu0 0.0
    %503 = vmatpush1.xpose.msra.mxu0 %v498
    %504 = vmatprep.subr.mxu0 0.0
    %505 = vmatpush1.xpose.msra.mxu0 0.0
    %506 = vmatprep.subr.mxu0 0.0
    %507 = vmatpush1.xpose.msra.mxu0 0.0
    %508 = vmatprep.subr.mxu0 0.0
    %509 = vmatpush1.xpose.msra.mxu0 0.0
    %510 = vmatprep.subr.mxu0 0.0
    %511 = vmatpush1.xpose.msra.mxu0 0.0
    %512 = vmatprep.subr.mxu0 0.0
    %513 = vmatpush1.xpose.msra.mxu0 0.0
    %514 = vmatprep.subr.mxu0 0.0
    %515 = vmatpush1.xpose.msra.mxu0 0.0
    %516 = vmatprep.subr.mxu0 0.0
    %517 = vmatpush1.xpose.msra.mxu0 0.0
    %518 = vmatprep.subr.mxu0 0.0
    %519 = vmatpush1.xpose.msra.mxu0 0.0
    %520 = vmatprep.subr.mxu0 0.0
    %521 = vmatpush1.xpose.msra.mxu0 0.0
    %522 = vmatprep.subr.mxu0 0.0
    %523 = vmatpush1.xpose.msra.mxu0 0.0
    %524 = vmatprep.subr.mxu0 0.0
    %525 = vmatpush1.xpose.msra.mxu0 0.0
    %526 = vmatprep.subr.mxu0 0.0
    %527 = vmatpush1.xpose.msra.mxu0 0.0
    %528 = vmatprep.subr.mxu0 0.0
    %529 = vmatpush1.xpose.msra.mxu0 0.0
    %530 = vmatprep.subr.mxu0 0.0
    %531 = vmatpush1.xpose.msra.mxu0 0.0
    %532 = vmatprep.subr.mxu0 0.0
    %533 = vmatpush1.xpose.msra.mxu0 0.0
    %534 = vmatprep.subr.mxu0 0.0
    %535 = vmatpush1.xpose.msra.mxu0 0.0
    %536 = vmatprep.subr.mxu0 0.0
    %537 = vmatpush1.xpose.msra.mxu0 0.0
    %538 = vmatprep.subr.mxu0 0.0
    %539 = vmatpush1.xpose.msra.mxu0 0.0
    %540 = vmatprep.subr.mxu0 0.0
    %541 = vmatpush1.xpose.msra.mxu0 0.0
    %542 = vmatprep.subr.mxu0 0.0
    %543 = vmatpush1.xpose.msra.mxu0 0.0
    %544 = vmatprep.subr.mxu0 0.0
    %545 = vmatpush1.xpose.msra.mxu0 0.0
    %546 = vmatprep.subr.mxu0 0.0
    %547 = vmatpush1.xpose.msra.mxu0 0.0
    %548 = vmatprep.subr.mxu0 0.0
    %549 = vmatpush1.xpose.msra.mxu0 0.0
    %550 = vmatprep.subr.mxu0 0.0
    %551 = vmatpush1.xpose.msra.mxu0 0.0
    %552 = vmatprep.subr.mxu0 0.0
    %553 = vmatpush1.xpose.msra.mxu0 0.0
    %554 = vmatprep.subr.mxu0 0.0
    %555 = vmatpush1.xpose.msra.mxu0 0.0
    %556 = vmatprep.subr.mxu0 0.0
    %557 = vmatpush1.xpose.msra.mxu0 0.0
    %558 = vmatprep.subr.mxu0 0.0
    %559 = vmatpush1.xpose.msra.mxu0 0.0
    %560 = vmatprep.subr.mxu0 0.0
    %561 = vmatpush1.xpose.msra.mxu0 0.0
    %562 = vmatprep.subr.mxu0 0.0
    %563 = vmatpush1.xpose.msra.mxu0 0.0
    %564 = vmatprep.mubr.f32.mxu0 0.0
    %565 = vmatmul.mubr.f32.gmra.mrb[0].mxu0 %v492
    %v566 = vpop.f32.mrb[0].mxu0
    %v567 = vadd.f32 %v56, %v566
    %v568 = vpop.f32.mrb[0].mxu0
    %569 = vmatprep.mubr.f32.mxu0 0.0
    %570 = vmatmul.mubr.f32.gmra.mrb[0].mxu0 %v494
    %v571 = vpop.f32.mrb[0].mxu0
    %v572 = vadd.f32 %v57, %v571
    %v573 = vpop.f32.mrb[0].mxu0
    %574 = vdwg.mxu0
    %v575 = vsel %vm316, %v567, -inf
    %576 = vmax.xlane.f32.xlu0 %v575
    %v577 = vpop.xlane.xlu0 %576
    %v578 = vsel %vm316, %v572, -inf
    %579 = vmax.xlane.f32.xlu0 %v578
    %v580 = vpop.xlane.xlu0 %579
    %v581 = vsub.f32 %v567, %v577
    %v582 = vsub.f32 %v572, %v580
    %v583 = vmul.f32 %v581, 1.442695
    %v584 = vpow.pop %v583
    %v585 = vmul.f32 %v582, 1.442695
    %v586 = vpow.pop %v585
    %v587 = vsel %vm316, %v584, 0.0
    %588 = vadd.xlane.f32.xlu0 %v587
    %v589 = vpop.xlane.xlu0 %588
    %v590 = vsel %vm316, %v586, 0.0
    %591 = vadd.xlane.f32.xlu0 %v590
    %v592 = vpop.xlane.xlu0 %591
    %593 = vrot.lane.b32.xlu0 %v170, 56
    %v594 = vpop.permute.xlu0 %593
    %595 = vrot.lane.b32.xlu0 %v176, 56
    %v596 = vpop.permute.xlu0 %595
    %v600 = vsel %vm316, %v584, 0
    %v603 = vsel %vm316, %v586, 0
    %605 = vmatprep.subr.mxu0 0.0
    %606 = vmatpush1.msra.mxu0 %v594
    %607 = vmatprep.subr.mxu0 0.0
    %608 = vmatpush1.msra.mxu0 %v596
    %609 = vmatprep.subr.mxu0 0.0
    %610 = vmatpush1.msra.mxu0 0.0
    %611 = vmatprep.subr.mxu0 0.0
    %612 = vmatpush1.msra.mxu0 0.0
    %613 = vmatprep.subr.mxu0 0.0
    %614 = vmatpush1.msra.mxu0 0.0
    %615 = vmatprep.subr.mxu0 0.0
    %616 = vmatpush1.msra.mxu0 0.0
    %617 = vmatprep.subr.mxu0 0.0
    %618 = vmatpush1.msra.mxu0 0.0
    %619 = vmatprep.subr.mxu0 0.0
    %620 = vmatpush1.msra.mxu0 0.0
    %621 = vmatprep.subr.mxu0 0.0
    %622 = vmatpush1.msra.mxu0 0.0
    %623 = vmatprep.subr.mxu0 0.0
    %624 = vmatpush1.msra.mxu0 0.0
    %625 = vmatprep.subr.mxu0 0.0
    %626 = vmatpush1.msra.mxu0 0.0
    %627 = vmatprep.subr.mxu0 0.0
    %628 = vmatpush1.msra.mxu0 0.0
    %629 = vmatprep.subr.mxu0 0.0
    %630 = vmatpush1.msra.mxu0 0.0
    %631 = vmatprep.subr.mxu0 0.0
    %632 = vmatpush1.msra.mxu0 0.0
    %633 = vmatprep.subr.mxu0 0.0
    %634 = vmatpush1.msra.mxu0 0.0
    %635 = vmatprep.subr.mxu0 0.0
    %636 = vmatpush1.msra.mxu0 0.0
    %637 = vmatprep.subr.mxu0 0.0
    %638 = vmatpush1.msra.mxu0 0.0
    %639 = vmatprep.subr.mxu0 0.0
    %640 = vmatpush1.msra.mxu0 0.0
    %641 = vmatprep.subr.mxu0 0.0
    %642 = vmatpush1.msra.mxu0 0.0
    %643 = vmatprep.subr.mxu0 0.0
    %644 = vmatpush1.msra.mxu0 0.0
    %645 = vmatprep.subr.mxu0 0.0
    %646 = vmatpush1.msra.mxu0 0.0
    %647 = vmatprep.subr.mxu0 0.0
    %648 = vmatpush1.msra.mxu0 0.0
    %649 = vmatprep.subr.mxu0 0.0
    %650 = vmatpush1.msra.mxu0 0.0
    %651 = vmatprep.subr.mxu0 0.0
    %652 = vmatpush1.msra.mxu0 0.0
    %653 = vmatprep.subr.mxu0 0.0
    %654 = vmatpush1.msra.mxu0 0.0
    %655 = vmatprep.subr.mxu0 0.0
    %656 = vmatpush1.msra.mxu0 0.0
    %657 = vmatprep.subr.mxu0 0.0
    %658 = vmatpush1.msra.mxu0 0.0
    %659 = vmatprep.subr.mxu0 0.0
    %660 = vmatpush1.msra.mxu0 0.0
    %661 = vmatprep.subr.mxu0 0.0
    %662 = vmatpush1.msra.mxu0 0.0
    %663 = vmatprep.subr.mxu0 0.0
    %664 = vmatpush1.msra.mxu0 0.0
    %665 = vmatprep.subr.mxu0 0.0
    %666 = vmatpush1.msra.mxu0 0.0
    %667 = vmatprep.subr.mxu0 0.0
    %668 = vmatpush1.msra.mxu0 0.0
    %669 = vmatprep.mubr.f32.mxu0 0.0
    %670 = vmatmul.mubr.f32.gmra.mrb[0].mxu0 %v600
    %v671 = vpop.f32.mrb[0].mxu0
    %v672 = vadd.f32 0.0, %v671
    %v673 = vpop.f32.mrb[0].mxu0
    %674 = vmatprep.mubr.f32.mxu0 0.0
    %675 = vmatmul.mubr.f32.gmra.mrb[0].mxu0 %v603
    %v676 = vpop.f32.mrb[0].mxu0
    %v677 = vadd.f32 0.0, %v676
    %v678 = vpop.f32.mrb[0].mxu0
    %679 = vdwg.mxu0
    %v680 = vrcp.pop %v589
    %v681 = vrcp.pop %v592
    %v682 = vmul.f32 %v672, %v680
    %v683 = vmul.f32 %v677, %v681
    %v685 = vsel %vm230, %v682, 0
    %v688 = vsel %vm230, %v683, 0
    %690 = vmatprep.subr.mxu0 0.0
    %691 = vmatpush1.msra.mxu0 %v59
    %692 = vmatprep.subr.mxu0 0.0
    %693 = vmatpush1.msra.mxu0 0.0
    %694 = vmatprep.subr.mxu0 0.0
    %695 = vmatpush1.msra.mxu0 0.0
    %696 = vmatprep.subr.mxu0 0.0
    %697 = vmatpush1.msra.mxu0 0.0
    %698 = vmatprep.subr.mxu0 0.0
    %699 = vmatpush1.msra.mxu0 0.0
    %700 = vmatprep.subr.mxu0 0.0
    %701 = vmatpush1.msra.mxu0 0.0
    %702 = vmatprep.subr.mxu0 0.0
    %703 = vmatpush1.msra.mxu0 0.0
    %704 = vmatprep.subr.mxu0 0.0
    %705 = vmatpush1.msra.mxu0 0.0
    %706 = vmatprep.subr.mxu0 0.0
    %707 = vmatpush1.msra.mxu0 0.0
    %708 = vmatprep.subr.mxu0 0.0
    %709 = vmatpush1.msra.mxu0 0.0
    %710 = vmatprep.subr.mxu0 0.0
    %711 = vmatpush1.msra.mxu0 0.0
    %712 = vmatprep.subr.mxu0 0.0
    %713 = vmatpush1.msra.mxu0 0.0
    %714 = vmatprep.subr.mxu0 0.0
    %715 = vmatpush1.msra.mxu0 0.0
    %716 = vmatprep.subr.mxu0 0.0
    %717 = vmatpush1.msra.mxu0 0.0
    %718 = vmatprep.subr.mxu0 0.0
    %719 = vmatpush1.msra.mxu0 0.0
    %720 = vmatprep.subr.mxu0 0.0
    %721 = vmatpush1.msra.mxu0 0.0
    %722 = vmatprep.subr.mxu0 0.0
    %723 = vmatpush1.msra.mxu0 0.0
    %724 = vmatprep.subr.mxu0 0.0
    %725 = vmatpush1.msra.mxu0 0.0
    %726 = vmatprep.subr.mxu0 0.0
    %727 = vmatpush1.msra.mxu0 0.0
    %728 = vmatprep.subr.mxu0 0.0
    %729 = vmatpush1.msra.mxu0 0.0
    %730 = vmatprep.subr.mxu0 0.0
    %731 = vmatpush1.msra.mxu0 0.0
    %732 = vmatprep.subr.mxu0 0.0
    %733 = vmatpush1.msra.mxu0 0.0
    %734 = vmatprep.subr.mxu0 0.0
    %735 = vmatpush1.msra.mxu0 0.0
    %736 = vmatprep.subr.mxu0 0.0
    %737 = vmatpush1.msra.mxu0 0.0
    %738 = vmatprep.subr.mxu0 0.0
    %739 = vmatpush1.msra.mxu0 0.0
    %740 = vmatprep.subr.mxu0 0.0
    %741 = vmatpush1.msra.mxu0 0.0
    %742 = vmatprep.subr.mxu0 0.0
    %743 = vmatpush1.msra.mxu0 0.0
    %744 = vmatprep.subr.mxu0 0.0
    %745 = vmatpush1.msra.mxu0 0.0
    %746 = vmatprep.subr.mxu0 0.0
    %747 = vmatpush1.msra.mxu0 0.0
    %748 = vmatprep.subr.mxu0 0.0
    %749 = vmatpush1.msra.mxu0 0.0
    %750 = vmatprep.subr.mxu0 0.0
    %751 = vmatpush1.msra.mxu0 0.0
    %752 = vmatprep.subr.mxu0 0.0
    %753 = vmatpush1.msra.mxu0 0.0
    %754 = vmatprep.mubr.f32.mxu0 0.0
    %755 = vmatmul.mubr.f32.gmra.mrb[0].mxu0 %v685
    %v756 = vpop.f32.mrb[0].mxu0
    %v757 = vadd.f32 0.0, %v756
    %v758 = vpop.f32.mrb[0].mxu0
    %759 = vmatprep.mubr.f32.mxu0 0.0
    %760 = vmatmul.mubr.f32.gmra.mrb[0].mxu0 %v688
    %v761 = vpop.f32.mrb[0].mxu0
    %v762 = vadd.f32 0.0, %v761
    %v763 = vpop.f32.mrb[0].mxu0
    %764 = vdwg.mxu0
    %v766 = vsel %vm230, %v426, 0
    %v769 = vsel %vm230, %v427, 0
    %771 = vmatprep.subr.mxu0 0.0
    %772 = vmatpush1.msra.mxu0 %v58
    %773 = vmatprep.subr.mxu0 0.0
    %774 = vmatpush1.msra.mxu0 0.0
    %775 = vmatprep.subr.mxu0 0.0
    %776 = vmatpush1.msra.mxu0 0.0
    %777 = vmatprep.subr.mxu0 0.0
    %778 = vmatpush1.msra.mxu0 0.0
    %779 = vmatprep.subr.mxu0 0.0
    %780 = vmatpush1.msra.mxu0 0.0
    %781 = vmatprep.subr.mxu0 0.0
    %782 = vmatpush1.msra.mxu0 0.0
    %783 = vmatprep.subr.mxu0 0.0
    %784 = vmatpush1.msra.mxu0 0.0
    %785 = vmatprep.subr.mxu0 0.0
    %786 = vmatpush1.msra.mxu0 0.0
    %787 = vmatprep.subr.mxu0 0.0
    %788 = vmatpush1.msra.mxu0 0.0
    %789 = vmatprep.subr.mxu0 0.0
    %790 = vmatpush1.msra.mxu0 0.0
    %791 = vmatprep.subr.mxu0 0.0
    %792 = vmatpush1.msra.mxu0 0.0
    %793 = vmatprep.subr.mxu0 0.0
    %794 = vmatpush1.msra.mxu0 0.0
    %795 = vmatprep.subr.mxu0 0.0
    %796 = vmatpush1.msra.mxu0 0.0
    %797 = vmatprep.subr.mxu0 0.0
    %798 = vmatpush1.msra.mxu0 0.0
    %799 = vmatprep.subr.mxu0 0.0
    %800 = vmatpush1.msra.mxu0 0.0
    %801 = vmatprep.subr.mxu0 0.0
    %802 = vmatpush1.msra.mxu0 0.0
    %803 = vmatprep.subr.mxu0 0.0
    %804 = vmatpush1.msra.mxu0 0.0
    %805 = vmatprep.subr.mxu0 0.0
    %806 = vmatpush1.msra.mxu0 0.0
    %807 = vmatprep.subr.mxu0 0.0
    %808 = vmatpush1.msra.mxu0 0.0
    %809 = vmatprep.subr.mxu0 0.0
    %810 = vmatpush1.msra.mxu0 0.0
    %811 = vmatprep.subr.mxu0 0.0
    %812 = vmatpush1.msra.mxu0 0.0
    %813 = vmatprep.subr.mxu0 0.0
    %814 = vmatpush1.msra.mxu0 0.0
    %815 = vmatprep.subr.mxu0 0.0
    %816 = vmatpush1.msra.mxu0 0.0
    %817 = vmatprep.subr.mxu0 0.0
    %818 = vmatpush1.msra.mxu0 0.0
    %819 = vmatprep.subr.mxu0 0.0
    %820 = vmatpush1.msra.mxu0 0.0
    %821 = vmatprep.subr.mxu0 0.0
    %822 = vmatpush1.msra.mxu0 0.0
    %823 = vmatprep.subr.mxu0 0.0
    %824 = vmatpush1.msra.mxu0 0.0
    %825 = vmatprep.subr.mxu0 0.0
    %826 = vmatpush1.msra.mxu0 0.0
    %827 = vmatprep.subr.mxu0 0.0
    %828 = vmatpush1.msra.mxu0 0.0
    %829 = vmatprep.subr.mxu0 0.0
    %830 = vmatpush1.msra.mxu0 0.0
    %831 = vmatprep.subr.mxu0 0.0
    %832 = vmatpush1.msra.mxu0 0.0
    %833 = vmatprep.subr.mxu0 0.0
    %834 = vmatpush1.msra.mxu0 0.0
    %835 = vmatprep.mubr.f32.mxu0 0.0
    %836 = vmatmul.mubr.f32.gmra.mrb[0].mxu0 %v766
    %v837 = vpop.f32.mrb[0].mxu0
    %v838 = vadd.f32 %v757, %v837
    %v839 = vpop.f32.mrb[0].mxu0
    %840 = vmatprep.mubr.f32.mxu0 0.0
    %841 = vmatmul.mubr.f32.gmra.mrb[0].mxu0 %v769
    %v842 = vpop.f32.mrb[0].mxu0
    %v843 = vadd.f32 %v762, %v842
    %v844 = vpop.f32.mrb[0].mxu0
    %845 = vdwg.mxu0
    %846 = vrot.lane.b32.xlu0 %v52, 16
    %v847 = vpop.permute.xlu0 %846
    %848 = vrot.lane.b32.xlu0 %v53, 16
    %v849 = vpop.permute.xlu0 %848
    %v852 = vmul.f32 %v170, %v847
    %v853 = vmul.f32 %v176, %v849
    %854 = vrot.lane.b32.xlu0 %v54, 112
    %v855 = vpop.permute.xlu0 %854
    %856 = vrot.lane.b32.xlu0 %v55, 112
    %v857 = vpop.permute.xlu0 %856
    %v860 = vmul.f32 %v170, %v855
    %v861 = vmul.f32 %v176, %v857
    %864 = vrot.lane.b32.xlu0 %v860, 32
    %v865 = vpop.permute.xlu0 %864
    %866 = vrot.lane.b32.xlu0 %v861, 32
    %v867 = vpop.permute.xlu0 %866
    %v870 = vadd.f32 %v852, %v865
    %v871 = vadd.f32 %v853, %v867
    %872 = vrot.lane.b32.xlu0 %v52, 48
    %v873 = vpop.permute.xlu0 %872
    %874 = vrot.lane.b32.xlu0 %v53, 48
    %v875 = vpop.permute.xlu0 %874
    %v878 = vmul.f32 %v170, %v873
    %v879 = vmul.f32 %v176, %v875
    %880 = vrot.lane.b32.xlu0 %v54, 16
    %v881 = vpop.permute.xlu0 %880
    %882 = vrot.lane.b32.xlu0 %v55, 16
    %v883 = vpop.permute.xlu0 %882
    %v886 = vmul.f32 %v172, %v881
    %v887 = vmul.f32 %v178, %v883
    %890 = vrot.lane.b32.xlu0 %v886, 32
    %v891 = vpop.permute.xlu0 %890
    %892 = vrot.lane.b32.xlu0 %v887, 32
    %v893 = vpop.permute.xlu0 %892
    %v896 = vadd.f32 %v878, %v891
    %v897 = vadd.f32 %v879, %v893
    %900 = vrot.lane.b32.xlu0 %v870, 112
    %v901 = vpop.permute.xlu0 %900
    %902 = vrot.lane.b32.xlu0 %v871, 112
    %v903 = vpop.permute.xlu0 %902
    %906 = vrot.lane.b32.xlu0 %v896, 80
    %v907 = vpop.permute.xlu0 %906
    %908 = vrot.lane.b32.xlu0 %v897, 80
    %v909 = vpop.permute.xlu0 %908
    %v910 = vsel %vm230, %v901, 0
    %v912 = vsel %vm230, %v903, 0
    %v914 = vsel %vm230, %v907, 0
    %v916 = vsel %vm230, %v909, 0
    %918 = vmatprep.subr.mxu0 0.0
    %919 = vmatpush1.xpose.msra.mxu0 %v914
    %920 = vmatprep.subr.mxu0 0.0
    %921 = vmatpush1.xpose.msra.mxu0 %v916
    %922 = vmatprep.subr.mxu0 0.0
    %923 = vmatpush1.xpose.msra.mxu0 0.0
    %924 = vmatprep.subr.mxu0 0.0
    %925 = vmatpush1.xpose.msra.mxu0 0.0
    %926 = vmatprep.subr.mxu0 0.0
    %927 = vmatpush1.xpose.msra.mxu0 0.0
    %928 = vmatprep.subr.mxu0 0.0
    %929 = vmatpush1.xpose.msra.mxu0 0.0
    %930 = vmatprep.subr.mxu0 0.0
    %931 = vmatpush1.xpose.msra.mxu0 0.0
    %932 = vmatprep.subr.mxu0 0.0
    %933 = vmatpush1.xpose.msra.mxu0 0.0
    %934 = vmatprep.subr.mxu0 0.0
    %935 = vmatpush1.xpose.msra.mxu0 0.0
    %936 = vmatprep.subr.mxu0 0.0
    %937 = vmatpush1.xpose.msra.mxu0 0.0
    %938 = vmatprep.subr.mxu0 0.0
    %939 = vmatpush1.xpose.msra.mxu0 0.0
    %940 = vmatprep.subr.mxu0 0.0
    %941 = vmatpush1.xpose.msra.mxu0 0.0
    %942 = vmatprep.subr.mxu0 0.0
    %943 = vmatpush1.xpose.msra.mxu0 0.0
    %944 = vmatprep.subr.mxu0 0.0
    %945 = vmatpush1.xpose.msra.mxu0 0.0
    %946 = vmatprep.subr.mxu0 0.0
    %947 = vmatpush1.xpose.msra.mxu0 0.0
    %948 = vmatprep.subr.mxu0 0.0
    %949 = vmatpush1.xpose.msra.mxu0 0.0
    %950 = vmatprep.subr.mxu0 0.0
    %951 = vmatpush1.xpose.msra.mxu0 0.0
    %952 = vmatprep.subr.mxu0 0.0
    %953 = vmatpush1.xpose.msra.mxu0 0.0
    %954 = vmatprep.subr.mxu0 0.0
    %955 = vmatpush1.xpose.msra.mxu0 0.0
    %956 = vmatprep.subr.mxu0 0.0
    %957 = vmatpush1.xpose.msra.mxu0 0.0
    %958 = vmatprep.subr.mxu0 0.0
    %959 = vmatpush1.xpose.msra.mxu0 0.0
    %960 = vmatprep.subr.mxu0 0.0
    %961 = vmatpush1.xpose.msra.mxu0 0.0
    %962 = vmatprep.subr.mxu0 0.0
    %963 = vmatpush1.xpose.msra.mxu0 0.0
    %964 = vmatprep.subr.mxu0 0.0
    %965 = vmatpush1.xpose.msra.mxu0 0.0
    %966 = vmatprep.subr.mxu0 0.0
    %967 = vmatpush1.xpose.msra.mxu0 0.0
    %968 = vmatprep.subr.mxu0 0.0
    %969 = vmatpush1.xpose.msra.mxu0 0.0
    %970 = vmatprep.subr.mxu0 0.0
    %971 = vmatpush1.xpose.msra.mxu0 0.0
    %972 = vmatprep.subr.mxu0 0.0
    %973 = vmatpush1.xpose.msra.mxu0 0.0
    %974 = vmatprep.subr.mxu0 0.0
    %975 = vmatpush1.xpose.msra.mxu0 0.0
    %976 = vmatprep.subr.mxu0 0.0
    %977 = vmatpush1.xpose.msra.mxu0 0.0
    %978 = vmatprep.subr.mxu0 0.0
    %979 = vmatpush1.xpose.msra.mxu0 0.0
    %980 = vmatprep.subr.mxu0 0.0
    %981 = vmatpush1.xpose.msra.mxu0 0.0
    %982 = vmatprep.mubr.f32.mxu0 0.0
    %983 = vmatmul.mubr.f32.gmra.mrb[0].mxu0 %v910
    %v984 = vpop.f32.mrb[0].mxu0
    %v985 = vadd.f32 %v56, %v984
    %v986 = vpop.f32.mrb[0].mxu0
    %987 = vmatprep.mubr.f32.mxu0 0.0
    %988 = vmatmul.mubr.f32.gmra.mrb[0].mxu0 %v912
    %v989 = vpop.f32.mrb[0].mxu0
    %v990 = vadd.f32 %v57, %v989
    %v991 = vpop.f32.mrb[0].mxu0
    %992 = vdwg.mxu0
    %v993 = vsel %vm316, %v985, -inf
    %994 = vmax.xlane.f32.xlu0 %v993
    %v995 = vpop.xlane.xlu0 %994
    %v996 = vsel %vm316, %v990, -inf
    %997 = vmax.xlane.f32.xlu0 %v996
    %v998 = vpop.xlane.xlu0 %997
    %v999 = vsub.f32 %v985, %v995
    %v1000 = vsub.f32 %v990, %v998
    %v1001 = vmul.f32 %v999, 1.442695
    %v1002 = vpow.pop %v1001
    %v1003 = vmul.f32 %v1000, 1.442695
    %v1004 = vpow.pop %v1003
    %v1005 = vsel %vm316, %v1002, 0.0
    %1006 = vadd.xlane.f32.xlu0 %v1005
    %v1007 = vpop.xlane.xlu0 %1006
    %v1008 = vsel %vm316, %v1004, 0.0
    %1009 = vadd.xlane.f32.xlu0 %v1008
    %v1010 = vpop.xlane.xlu0 %1009
    %1011 = vrot.lane.b32.xlu0 %v170, 48
    %v1012 = vpop.permute.xlu0 %1011
    %1013 = vrot.lane.b32.xlu0 %v176, 48
    %v1014 = vpop.permute.xlu0 %1013
    %v1018 = vsel %vm316, %v1002, 0
    %v1021 = vsel %vm316, %v1004, 0
    %1023 = vmatprep.subr.mxu0 0.0
    %1024 = vmatpush1.msra.mxu0 %v1012
    %1025 = vmatprep.subr.mxu0 0.0
    %1026 = vmatpush1.msra.mxu0 %v1014
    %1027 = vmatprep.subr.mxu0 0.0
    %1028 = vmatpush1.msra.mxu0 0.0
    %1029 = vmatprep.subr.mxu0 0.0
    %1030 = vmatpush1.msra.mxu0 0.0
    %1031 = vmatprep.subr.mxu0 0.0
    %1032 = vmatpush1.msra.mxu0 0.0
    %1033 = vmatprep.subr.mxu0 0.0
    %1034 = vmatpush1.msra.mxu0 0.0
    %1035 = vmatprep.subr.mxu0 0.0
    %1036 = vmatpush1.msra.mxu0 0.0
    %1037 = vmatprep.subr.mxu0 0.0
    %1038 = vmatpush1.msra.mxu0 0.0
    %1039 = vmatprep.subr.mxu0 0.0
    %1040 = vmatpush1.msra.mxu0 0.0
    %1041 = vmatprep.subr.mxu0 0.0
    %1042 = vmatpush1.msra.mxu0 0.0
    %1043 = vmatprep.subr.mxu0 0.0
    %1044 = vmatpush1.msra.mxu0 0.0
    %1045 = vmatprep.subr.mxu0 0.0
    %1046 = vmatpush1.msra.mxu0 0.0
    %1047 = vmatprep.subr.mxu0 0.0
    %1048 = vmatpush1.msra.mxu0 0.0
    %1049 = vmatprep.subr.mxu0 0.0
    %1050 = vmatpush1.msra.mxu0 0.0
    %1051 = vmatprep.subr.mxu0 0.0
    %1052 = vmatpush1.msra.mxu0 0.0
    %1053 = vmatprep.subr.mxu0 0.0
    %1054 = vmatpush1.msra.mxu0 0.0
    %1055 = vmatprep.subr.mxu0 0.0
    %1056 = vmatpush1.msra.mxu0 0.0
    %1057 = vmatprep.subr.mxu0 0.0
    %1058 = vmatpush1.msra.mxu0 0.0
    %1059 = vmatprep.subr.mxu0 0.0
    %1060 = vmatpush1.msra.mxu0 0.0
    %1061 = vmatprep.subr.mxu0 0.0
    %1062 = vmatpush1.msra.mxu0 0.0
    %1063 = vmatprep.subr.mxu0 0.0
    %1064 = vmatpush1.msra.mxu0 0.0
    %1065 = vmatprep.subr.mxu0 0.0
    %1066 = vmatpush1.msra.mxu0 0.0
    %1067 = vmatprep.subr.mxu0 0.0
    %1068 = vmatpush1.msra.mxu0 0.0
    %1069 = vmatprep.subr.mxu0 0.0
    %1070 = vmatpush1.msra.mxu0 0.0
    %1071 = vmatprep.subr.mxu0 0.0
    %1072 = vmatpush1.msra.mxu0 0.0
    %1073 = vmatprep.subr.mxu0 0.0
    %1074 = vmatpush1.msra.mxu0 0.0
    %1075 = vmatprep.subr.mxu0 0.0
    %1076 = vmatpush1.msra.mxu0 0.0
    %1077 = vmatprep.subr.mxu0 0.0
    %1078 = vmatpush1.msra.mxu0 0.0
    %1079 = vmatprep.subr.mxu0 0.0
    %1080 = vmatpush1.msra.mxu0 0.0
    %1081 = vmatprep.subr.mxu0 0.0
    %1082 = vmatpush1.msra.mxu0 0.0
    %1083 = vmatprep.subr.mxu0 0.0
    %1084 = vmatpush1.msra.mxu0 0.0
    %1085 = vmatprep.subr.mxu0 0.0
    %1086 = vmatpush1.msra.mxu0 0.0
    %1087 = vmatprep.mubr.f32.mxu0 0.0
    %1088 = vmatmul.mubr.f32.gmra.mrb[0].mxu0 %v1018
    %v1089 = vpop.f32.mrb[0].mxu0
    %v1090 = vadd.f32 0.0, %v1089
    %v1091 = vpop.f32.mrb[0].mxu0
    %1092 = vmatprep.mubr.f32.mxu0 0.0
    %1093 = vmatmul.mubr.f32.gmra.mrb[0].mxu0 %v1021
    %v1094 = vpop.f32.mrb[0].mxu0
    %v1095 = vadd.f32 0.0, %v1094
    %v1096 = vpop.f32.mrb[0].mxu0
    %1097 = vdwg.mxu0
    %v1098 = vrcp.pop %v1007
    %v1099 = vrcp.pop %v1010
    %v1100 = vmul.f32 %v1090, %v1098
    %v1101 = vmul.f32 %v1095, %v1099
    %v1103 = vsel %vm230, %v1100, 0
    %v1106 = vsel %vm230, %v1101, 0
    %1108 = vmatprep.subr.mxu0 0.0
    %1109 = vmatpush1.msra.mxu0 %v60
    %1110 = vmatprep.subr.mxu0 0.0
    %1111 = vmatpush1.msra.mxu0 0.0
    %1112 = vmatprep.subr.mxu0 0.0
    %1113 = vmatpush1.msra.mxu0 0.0
    %1114 = vmatprep.subr.mxu0 0.0
    %1115 = vmatpush1.msra.mxu0 0.0
    %1116 = vmatprep.subr.mxu0 0.0
    %1117 = vmatpush1.msra.mxu0 0.0
    %1118 = vmatprep.subr.mxu0 0.0
    %1119 = vmatpush1.msra.mxu0 0.0
    %1120 = vmatprep.subr.mxu0 0.0
    %1121 = vmatpush1.msra.mxu0 0.0
    %1122 = vmatprep.subr.mxu0 0.0
    %1123 = vmatpush1.msra.mxu0 0.0
    %1124 = vmatprep.subr.mxu0 0.0
    %1125 = vmatpush1.msra.mxu0 0.0
    %1126 = vmatprep.subr.mxu0 0.0
    %1127 = vmatpush1.msra.mxu0 0.0
    %1128 = vmatprep.subr.mxu0 0.0
    %1129 = vmatpush1.msra.mxu0 0.0
    %1130 = vmatprep.subr.mxu0 0.0
    %1131 = vmatpush1.msra.mxu0 0.0
    %1132 = vmatprep.subr.mxu0 0.0
    %1133 = vmatpush1.msra.mxu0 0.0
    %1134 = vmatprep.subr.mxu0 0.0
    %1135 = vmatpush1.msra.mxu0 0.0
    %1136 = vmatprep.subr.mxu0 0.0
    %1137 = vmatpush1.msra.mxu0 0.0
    %1138 = vmatprep.subr.mxu0 0.0
    %1139 = vmatpush1.msra.mxu0 0.0
    %1140 = vmatprep.subr.mxu0 0.0
    %1141 = vmatpush1.msra.mxu0 0.0
    %1142 = vmatprep.subr.mxu0 0.0
    %1143 = vmatpush1.msra.mxu0 0.0
    %1144 = vmatprep.subr.mxu0 0.0
    %1145 = vmatpush1.msra.mxu0 0.0
    %1146 = vmatprep.subr.mxu0 0.0
    %1147 = vmatpush1.msra.mxu0 0.0
    %1148 = vmatprep.subr.mxu0 0.0
    %1149 = vmatpush1.msra.mxu0 0.0
    %1150 = vmatprep.subr.mxu0 0.0
    %1151 = vmatpush1.msra.mxu0 0.0
    %1152 = vmatprep.subr.mxu0 0.0
    %1153 = vmatpush1.msra.mxu0 0.0
    %1154 = vmatprep.subr.mxu0 0.0
    %1155 = vmatpush1.msra.mxu0 0.0
    %1156 = vmatprep.subr.mxu0 0.0
    %1157 = vmatpush1.msra.mxu0 0.0
    %1158 = vmatprep.subr.mxu0 0.0
    %1159 = vmatpush1.msra.mxu0 0.0
    %1160 = vmatprep.subr.mxu0 0.0
    %1161 = vmatpush1.msra.mxu0 0.0
    %1162 = vmatprep.subr.mxu0 0.0
    %1163 = vmatpush1.msra.mxu0 0.0
    %1164 = vmatprep.subr.mxu0 0.0
    %1165 = vmatpush1.msra.mxu0 0.0
    %1166 = vmatprep.subr.mxu0 0.0
    %1167 = vmatpush1.msra.mxu0 0.0
    %1168 = vmatprep.subr.mxu0 0.0
    %1169 = vmatpush1.msra.mxu0 0.0
    %1170 = vmatprep.subr.mxu0 0.0
    %1171 = vmatpush1.msra.mxu0 0.0
    %1172 = vmatprep.mubr.f32.mxu0 0.0
    %1173 = vmatmul.mubr.f32.gmra.mrb[0].mxu0 %v1103
    %v1174 = vpop.f32.mrb[0].mxu0
    %v1175 = vadd.f32 0.0, %v1174
    %v1176 = vpop.f32.mrb[0].mxu0
    %1177 = vmatprep.mubr.f32.mxu0 0.0
    %1178 = vmatmul.mubr.f32.gmra.mrb[0].mxu0 %v1106
    %v1179 = vpop.f32.mrb[0].mxu0
    %v1180 = vadd.f32 0.0, %v1179
    %v1181 = vpop.f32.mrb[0].mxu0
    %1182 = vdwg.mxu0
    %v1183 = vadd.f32 %v838, %v1175
    %v1184 = vadd.f32 %v843, %v1180
    %1185 = vrot.lane.b32.xlu0 %v52, 24
    %v1186 = vpop.permute.xlu0 %1185
    %1187 = vrot.lane.b32.xlu0 %v53, 24
    %v1188 = vpop.permute.xlu0 %1187
    %v1191 = vmul.f32 %v170, %v1186
    %v1192 = vmul.f32 %v176, %v1188
    %1193 = vrot.lane.b32.xlu0 %v54, 120
    %v1194 = vpop.permute.xlu0 %1193
    %1195 = vrot.lane.b32.xlu0 %v55, 120
    %v1196 = vpop.permute.xlu0 %1195
    %v1199 = vmul.f32 %v170, %v1194
    %v1200 = vmul.f32 %v176, %v1196
    %1203 = vrot.lane.b32.xlu0 %v1199, 32
    %v1204 = vpop.permute.xlu0 %1203
    %1205 = vrot.lane.b32.xlu0 %v1200, 32
    %v1206 = vpop.permute.xlu0 %1205
    %v1209 = vadd.f32 %v1191, %v1204
    %v1210 = vadd.f32 %v1192, %v1206
    %1211 = vrot.lane.b32.xlu0 %v52, 56
    %v1212 = vpop.permute.xlu0 %1211
    %1213 = vrot.lane.b32.xlu0 %v53, 56
    %v1214 = vpop.permute.xlu0 %1213
    %v1217 = vmul.f32 %v170, %v1212
    %v1218 = vmul.f32 %v176, %v1214
    %1219 = vrot.lane.b32.xlu0 %v54, 24
    %v1220 = vpop.permute.xlu0 %1219
    %1221 = vrot.lane.b32.xlu0 %v55, 24
    %v1222 = vpop.permute.xlu0 %1221
    %v1225 = vmul.f32 %v172, %v1220
    %v1226 = vmul.f32 %v178, %v1222
    %1229 = vrot.lane.b32.xlu0 %v1225, 32
    %v1230 = vpop.permute.xlu0 %1229
    %1231 = vrot.lane.b32.xlu0 %v1226, 32
    %v1232 = vpop.permute.xlu0 %1231
    %v1235 = vadd.f32 %v1217, %v1230
    %v1236 = vadd.f32 %v1218, %v1232
    %1239 = vrot.lane.b32.xlu0 %v1209, 104
    %v1240 = vpop.permute.xlu0 %1239
    %1241 = vrot.lane.b32.xlu0 %v1210, 104
    %v1242 = vpop.permute.xlu0 %1241
    %1245 = vrot.lane.b32.xlu0 %v1235, 72
    %v1246 = vpop.permute.xlu0 %1245
    %1247 = vrot.lane.b32.xlu0 %v1236, 72
    %v1248 = vpop.permute.xlu0 %1247
    %v1249 = vsel %vm230, %v1240, 0
    %v1251 = vsel %vm230, %v1242, 0
    %v1253 = vsel %vm230, %v1246, 0
    %v1255 = vsel %vm230, %v1248, 0
    %1257 = vmatprep.subr.mxu0 0.0
    %1258 = vmatpush1.xpose.msra.mxu0 %v1253
    %1259 = vmatprep.subr.mxu0 0.0
    %1260 = vmatpush1.xpose.msra.mxu0 %v1255
    %1261 = vmatprep.subr.mxu0 0.0
    %1262 = vmatpush1.xpose.msra.mxu0 0.0
    %1263 = vmatprep.subr.mxu0 0.0
    %1264 = vmatpush1.xpose.msra.mxu0 0.0
    %1265 = vmatprep.subr.mxu0 0.0
    %1266 = vmatpush1.xpose.msra.mxu0 0.0
    %1267 = vmatprep.subr.mxu0 0.0
    %1268 = vmatpush1.xpose.msra.mxu0 0.0
    %1269 = vmatprep.subr.mxu0 0.0
    %1270 = vmatpush1.xpose.msra.mxu0 0.0
    %1271 = vmatprep.subr.mxu0 0.0
    %1272 = vmatpush1.xpose.msra.mxu0 0.0
    %1273 = vmatprep.subr.mxu0 0.0
    %1274 = vmatpush1.xpose.msra.mxu0 0.0
    %1275 = vmatprep.subr.mxu0 0.0
    %1276 = vmatpush1.xpose.msra.mxu0 0.0
    %1277 = vmatprep.subr.mxu0 0.0
    %1278 = vmatpush1.xpose.msra.mxu0 0.0
    %1279 = vmatprep.subr.mxu0 0.0
    %1280 = vmatpush1.xpose.msra.mxu0 0.0
    %1281 = vmatprep.subr.mxu0 0.0
    %1282 = vmatpush1.xpose.msra.mxu0 0.0
    %1283 = vmatprep.subr.mxu0 0.0
    %1284 = vmatpush1.xpose.msra.mxu0 0.0
    %1285 = vmatprep.subr.mxu0 0.0
    %1286 = vmatpush1.xpose.msra.mxu0 0.0
    %1287 = vmatprep.subr.mxu0 0.0
    %1288 = vmatpush1.xpose.msra.mxu0 0.0
    %1289 = vmatprep.subr.mxu0 0.0
    %1290 = vmatpush1.xpose.msra.mxu0 0.0
    %1291 = vmatprep.subr.mxu0 0.0
    %1292 = vmatpush1.xpose.msra.mxu0 0.0
    %1293 = vmatprep.subr.mxu0 0.0
    %1294 = vmatpush1.xpose.msra.mxu0 0.0
    %1295 = vmatprep.subr.mxu0 0.0
    %1296 = vmatpush1.xpose.msra.mxu0 0.0
    %1297 = vmatprep.subr.mxu0 0.0
    %1298 = vmatpush1.xpose.msra.mxu0 0.0
    %1299 = vmatprep.subr.mxu0 0.0
    %1300 = vmatpush1.xpose.msra.mxu0 0.0
    %1301 = vmatprep.subr.mxu0 0.0
    %1302 = vmatpush1.xpose.msra.mxu0 0.0
    %1303 = vmatprep.subr.mxu0 0.0
    %1304 = vmatpush1.xpose.msra.mxu0 0.0
    %1305 = vmatprep.subr.mxu0 0.0
    %1306 = vmatpush1.xpose.msra.mxu0 0.0
    %1307 = vmatprep.subr.mxu0 0.0
    %1308 = vmatpush1.xpose.msra.mxu0 0.0
    %1309 = vmatprep.subr.mxu0 0.0
    %1310 = vmatpush1.xpose.msra.mxu0 0.0
    %1311 = vmatprep.subr.mxu0 0.0
    %1312 = vmatpush1.xpose.msra.mxu0 0.0
    %1313 = vmatprep.subr.mxu0 0.0
    %1314 = vmatpush1.xpose.msra.mxu0 0.0
    %1315 = vmatprep.subr.mxu0 0.0
    %1316 = vmatpush1.xpose.msra.mxu0 0.0
    %1317 = vmatprep.subr.mxu0 0.0
    %1318 = vmatpush1.xpose.msra.mxu0 0.0
    %1319 = vmatprep.subr.mxu0 0.0
    %1320 = vmatpush1.xpose.msra.mxu0 0.0
    %1321 = vmatprep.mubr.f32.mxu0 0.0
    %1322 = vmatmul.mubr.f32.gmra.mrb[0].mxu0 %v1249
    %v1323 = vpop.f32.mrb[0].mxu0
    %v1324 = vadd.f32 %v56, %v1323
    %v1325 = vpop.f32.mrb[0].mxu0
    %1326 = vmatprep.mubr.f32.mxu0 0.0
    %1327 = vmatmul.mubr.f32.gmra.mrb[0].mxu0 %v1251
    %v1328 = vpop.f32.mrb[0].mxu0
    %v1329 = vadd.f32 %v57, %v1328
    %v1330 = vpop.f32.mrb[0].mxu0
    %1331 = vdwg.mxu0
    %v1332 = vsel %vm316, %v1324, -inf
    %1333 = vmax.xlane.f32.xlu0 %v1332
    %v1334 = vpop.xlane.xlu0 %1333
    %v1335 = vsel %vm316, %v1329, -inf
    %1336 = vmax.xlane.f32.xlu0 %v1335
    %v1337 = vpop.xlane.xlu0 %1336
    %v1338 = vsub.f32 %v1324, %v1334
    %v1339 = vsub.f32 %v1329, %v1337
    %v1340 = vmul.f32 %v1338, 1.442695
    %v1341 = vpow.pop %v1340
    %v1342 = vmul.f32 %v1339, 1.442695
    %v1343 = vpow.pop %v1342
    %v1344 = vsel %vm316, %v1341, 0.0
    %1345 = vadd.xlane.f32.xlu0 %v1344
    %v1346 = vpop.xlane.xlu0 %1345
    %v1347 = vsel %vm316, %v1343, 0.0
    %1348 = vadd.xlane.f32.xlu0 %v1347
    %v1349 = vpop.xlane.xlu0 %1348
    %1350 = vrot.lane.b32.xlu0 %v170, 40
    %v1351 = vpop.permute.xlu0 %1350
    %1352 = vrot.lane.b32.xlu0 %v176, 40
    %v1353 = vpop.permute.xlu0 %1352
    %v1357 = vsel %vm316, %v1341, 0
    %v1360 = vsel %vm316, %v1343, 0
    %1362 = vmatprep.subr.mxu0 0.0
    %1363 = vmatpush1.msra.mxu0 %v1351
    %1364 = vmatprep.subr.mxu0 0.0
    %1365 = vmatpush1.msra.mxu0 %v1353
    %1366 = vmatprep.subr.mxu0 0.0
    %1367 = vmatpush1.msra.mxu0 0.0
    %1368 = vmatprep.subr.mxu0 0.0
    %1369 = vmatpush1.msra.mxu0 0.0
    %1370 = vmatprep.subr.mxu0 0.0
    %1371 = vmatpush1.msra.mxu0 0.0
    %1372 = vmatprep.subr.mxu0 0.0
    %1373 = vmatpush1.msra.mxu0 0.0
    %1374 = vmatprep.subr.mxu0 0.0
    %1375 = vmatpush1.msra.mxu0 0.0
    %1376 = vmatprep.subr.mxu0 0.0
    %1377 = vmatpush1.msra.mxu0 0.0
    %1378 = vmatprep.subr.mxu0 0.0
    %1379 = vmatpush1.msra.mxu0 0.0
    %1380 = vmatprep.subr.mxu0 0.0
    %1381 = vmatpush1.msra.mxu0 0.0
    %1382 = vmatprep.subr.mxu0 0.0
    %1383 = vmatpush1.msra.mxu0 0.0
    %1384 = vmatprep.subr.mxu0 0.0
    %1385 = vmatpush1.msra.mxu0 0.0
    %1386 = vmatprep.subr.mxu0 0.0
    %1387 = vmatpush1.msra.mxu0 0.0
    %1388 = vmatprep.subr.mxu0 0.0
    %1389 = vmatpush1.msra.mxu0 0.0
    %1390 = vmatprep.subr.mxu0 0.0
    %1391 = vmatpush1.msra.mxu0 0.0
    %1392 = vmatprep.subr.mxu0 0.0
    %1393 = vmatpush1.msra.mxu0 0.0
    %1394 = vmatprep.subr.mxu0 0.0
    %1395 = vmatpush1.msra.mxu0 0.0
    %1396 = vmatprep.subr.mxu0 0.0
    %1397 = vmatpush1.msra.mxu0 0.0
    %1398 = vmatprep.subr.mxu0 0.0
    %1399 = vmatpush1.msra.mxu0 0.0
    %1400 = vmatprep.subr.mxu0 0.0
    %1401 = vmatpush1.msra.mxu0 0.0
    %1402 = vmatprep.subr.mxu0 0.0
    %1403 = vmatpush1.msra.mxu0 0.0
    %1404 = vmatprep.subr.mxu0 0.0
    %1405 = vmatpush1.msra.mxu0 0.0
    %1406 = vmatprep.subr.mxu0 0.0
    %1407 = vmatpush1.msra.mxu0 0.0
    %1408 = vmatprep.subr.mxu0 0.0
    %1409 = vmatpush1.msra.mxu0 0.0
    %1410 = vmatprep.subr.mxu0 0.0
    %1411 = vmatpush1.msra.mxu0 0.0
    %1412 = vmatprep.subr.mxu0 0.0
    %1413 = vmatpush1.msra.mxu0 0.0
    %1414 = vmatprep.subr.mxu0 0.0
    %1415 = vmatpush1.msra.mxu0 0.0
    %1416 = vmatprep.subr.mxu0 0.0
    %1417 = vmatpush1.msra.mxu0 0.0
    %1418 = vmatprep.subr.mxu0 0.0
    %1419 = vmatpush1.msra.mxu0 0.0
    %1420 = vmatprep.subr.mxu0 0.0
    %1421 = vmatpush1.msra.mxu0 0.0
    %1422 = vmatprep.subr.mxu0 0.0
    %1423 = vmatpush1.msra.mxu0 0.0
    %1424 = vmatprep.subr.mxu0 0.0
    %1425 = vmatpush1.msra.mxu0 0.0
    %1426 = vmatprep.mubr.f32.mxu0 0.0
    %1427 = vmatmul.mubr.f32.gmra.mrb[0].mxu0 %v1357
    %v1428 = vpop.f32.mrb[0].mxu0
    %v1429 = vadd.f32 0.0, %v1428
    %v1430 = vpop.f32.mrb[0].mxu0
    %1431 = vmatprep.mubr.f32.mxu0 0.0
    %1432 = vmatmul.mubr.f32.gmra.mrb[0].mxu0 %v1360
    %v1433 = vpop.f32.mrb[0].mxu0
    %v1434 = vadd.f32 0.0, %v1433
    %v1435 = vpop.f32.mrb[0].mxu0
    %1436 = vdwg.mxu0
    %v1437 = vrcp.pop %v1346
    %v1438 = vrcp.pop %v1349
    %v1439 = vmul.f32 %v1429, %v1437
    %v1440 = vmul.f32 %v1434, %v1438
    %v1442 = vsel %vm230, %v1439, 0
    %v1445 = vsel %vm230, %v1440, 0
    %1447 = vmatprep.subr.mxu0 0.0
    %1448 = vmatpush1.msra.mxu0 %v61
    %1449 = vmatprep.subr.mxu0 0.0
    %1450 = vmatpush1.msra.mxu0 0.0
    %1451 = vmatprep.subr.mxu0 0.0
    %1452 = vmatpush1.msra.mxu0 0.0
    %1453 = vmatprep.subr.mxu0 0.0
    %1454 = vmatpush1.msra.mxu0 0.0
    %1455 = vmatprep.subr.mxu0 0.0
    %1456 = vmatpush1.msra.mxu0 0.0
    %1457 = vmatprep.subr.mxu0 0.0
    %1458 = vmatpush1.msra.mxu0 0.0
    %1459 = vmatprep.subr.mxu0 0.0
    %1460 = vmatpush1.msra.mxu0 0.0
    %1461 = vmatprep.subr.mxu0 0.0
    %1462 = vmatpush1.msra.mxu0 0.0
    %1463 = vmatprep.subr.mxu0 0.0
    %1464 = vmatpush1.msra.mxu0 0.0
    %1465 = vmatprep.subr.mxu0 0.0
    %1466 = vmatpush1.msra.mxu0 0.0
    %1467 = vmatprep.subr.mxu0 0.0
    %1468 = vmatpush1.msra.mxu0 0.0
    %1469 = vmatprep.subr.mxu0 0.0
    %1470 = vmatpush1.msra.mxu0 0.0
    %1471 = vmatprep.subr.mxu0 0.0
    %1472 = vmatpush1.msra.mxu0 0.0
    %1473 = vmatprep.subr.mxu0 0.0
    %1474 = vmatpush1.msra.mxu0 0.0
    %1475 = vmatprep.subr.mxu0 0.0
    %1476 = vmatpush1.msra.mxu0 0.0
    %1477 = vmatprep.subr.mxu0 0.0
    %1478 = vmatpush1.msra.mxu0 0.0
    %1479 = vmatprep.subr.mxu0 0.0
    %1480 = vmatpush1.msra.mxu0 0.0
    %1481 = vmatprep.subr.mxu0 0.0
    %1482 = vmatpush1.msra.mxu0 0.0
    %1483 = vmatprep.subr.mxu0 0.0
    %1484 = vmatpush1.msra.mxu0 0.0
    %1485 = vmatprep.subr.mxu0 0.0
    %1486 = vmatpush1.msra.mxu0 0.0
    %1487 = vmatprep.subr.mxu0 0.0
    %1488 = vmatpush1.msra.mxu0 0.0
    %1489 = vmatprep.subr.mxu0 0.0
    %1490 = vmatpush1.msra.mxu0 0.0
    %1491 = vmatprep.subr.mxu0 0.0
    %1492 = vmatpush1.msra.mxu0 0.0
    %1493 = vmatprep.subr.mxu0 0.0
    %1494 = vmatpush1.msra.mxu0 0.0
    %1495 = vmatprep.subr.mxu0 0.0
    %1496 = vmatpush1.msra.mxu0 0.0
    %1497 = vmatprep.subr.mxu0 0.0
    %1498 = vmatpush1.msra.mxu0 0.0
    %1499 = vmatprep.subr.mxu0 0.0
    %1500 = vmatpush1.msra.mxu0 0.0
    %1501 = vmatprep.subr.mxu0 0.0
    %1502 = vmatpush1.msra.mxu0 0.0
    %1503 = vmatprep.subr.mxu0 0.0
    %1504 = vmatpush1.msra.mxu0 0.0
    %1505 = vmatprep.subr.mxu0 0.0
    %1506 = vmatpush1.msra.mxu0 0.0
    %1507 = vmatprep.subr.mxu0 0.0
    %1508 = vmatpush1.msra.mxu0 0.0
    %1509 = vmatprep.subr.mxu0 0.0
    %1510 = vmatpush1.msra.mxu0 0.0
    %1511 = vmatprep.mubr.f32.mxu0 0.0
    %1512 = vmatmul.mubr.f32.gmra.mrb[0].mxu0 %v1442
    %v1513 = vpop.f32.mrb[0].mxu0
    %v1514 = vadd.f32 0.0, %v1513
    %v1515 = vpop.f32.mrb[0].mxu0
    %1516 = vmatprep.mubr.f32.mxu0 0.0
    %1517 = vmatmul.mubr.f32.gmra.mrb[0].mxu0 %v1445
    %v1518 = vpop.f32.mrb[0].mxu0
    %v1519 = vadd.f32 0.0, %v1518
    %v1520 = vpop.f32.mrb[0].mxu0
    %1521 = vdwg.mxu0
    %v1522 = vadd.f32 %v1183, %v1514
    %v1523 = vadd.f32 %v1184, %v1519
    %v1524 = vadd.f32 %v50, %v1522
    %v1525 = vadd.f32 %v51, %v1523
    %v1526 = vld [vmem:[%s4] sm:$0x1]
    %v1527 = vmul.f32 %v1524, %v1524
    %v1528 = vmul.f32 %v1525, %v1525
    %v1529 = vsel %vm65, %v1527, 0.0
    %1530 = vadd.xlane.f32.xlu0 %v1529
    %v1531 = vpop.xlane.xlu0 %1530
    %v1532 = vsel %vm65, %v1528, 0.0
    %1533 = vadd.xlane.f32.xlu0 %v1532
    %v1534 = vpop.xlane.xlu0 %1533
    %v1535 = vmul.f32 %v1531, %v72
    %v1536 = vmul.f32 %v1534, %v72
    %v1537 = vadd.f32 %v1535, 1e-06
    %v1538 = vadd.f32 %v1536, 1e-06
    %v1539 = vrsqrt.pop %v1537
    %v1540 = vrsqrt.pop %v1538
    %v1541 = vmul.f32 %v1524, %v1539
    %v1542 = vmul.f32 %v1525, %v1540
    %v1544 = vlaneseq
    %v1545 = vshrl.u32 %v1544, 7
    %v1546 = vsub.s32 0, %v1545
    %v1547 = vrot.slane %v1526, %v1546
    %v1549 = vmul.f32 %v1541, %v1547
    %v1550 = vmul.f32 %v1542, %v1547
    %v1551 = vld [vmem:[%s5] sm:$0xff]
    %v1552 = vld [vmem:[%s5 + $0x8] sm:$0xff]
    %v1553 = vld [vmem:[%s5 + $0x10] sm:$0xff]
    %v1554 = vld [vmem:[%s5 + $0x18] sm:$0xff]
    %v1556 = vsel %vm65, %v1549, 0
    %v1559 = vsel %vm65, %v1550, 0
    %1561 = vmatprep.subr.mxu0 0.0
    %1562 = vmatpush1.msra.mxu0 %v1551
    %1563 = vmatprep.subr.mxu0 0.0
    %1564 = vmatpush1.msra.mxu0 %v1552
    %1565 = vmatprep.subr.mxu0 0.0
    %1566 = vmatpush1.msra.mxu0 %v1553
    %1567 = vmatprep.subr.mxu0 0.0
    %1568 = vmatpush1.msra.mxu0 %v1554
    %1569 = vmatprep.subr.mxu0 0.0
    %1570 = vmatpush1.msra.mxu0 0.0
    %1571 = vmatprep.subr.mxu0 0.0
    %1572 = vmatpush1.msra.mxu0 0.0
    %1573 = vmatprep.subr.mxu0 0.0
    %1574 = vmatpush1.msra.mxu0 0.0
    %1575 = vmatprep.subr.mxu0 0.0
    %1576 = vmatpush1.msra.mxu0 0.0
    %1577 = vmatprep.subr.mxu0 0.0
    %1578 = vmatpush1.msra.mxu0 0.0
    %1579 = vmatprep.subr.mxu0 0.0
    %1580 = vmatpush1.msra.mxu0 0.0
    %1581 = vmatprep.subr.mxu0 0.0
    %1582 = vmatpush1.msra.mxu0 0.0
    %1583 = vmatprep.subr.mxu0 0.0
    %1584 = vmatpush1.msra.mxu0 0.0
    %1585 = vmatprep.subr.mxu0 0.0
    %1586 = vmatpush1.msra.mxu0 0.0
    %1587 = vmatprep.subr.mxu0 0.0
    %1588 = vmatpush1.msra.mxu0 0.0
    %1589 = vmatprep.subr.mxu0 0.0
    %1590 = vmatpush1.msra.mxu0 0.0
    %1591 = vmatprep.subr.mxu0 0.0
    %1592 = vmatpush1.msra.mxu0 0.0
    %1593 = vmatprep.subr.mxu0 0.0
    %1594 = vmatpush1.msra.mxu0 0.0
    %1595 = vmatprep.subr.mxu0 0.0
    %1596 = vmatpush1.msra.mxu0 0.0
    %1597 = vmatprep.subr.mxu0 0.0
    %1598 = vmatpush1.msra.mxu0 0.0
    %1599 = vmatprep.subr.mxu0 0.0
    %1600 = vmatpush1.msra.mxu0 0.0
    %1601 = vmatprep.subr.mxu0 0.0
    %1602 = vmatpush1.msra.mxu0 0.0
    %1603 = vmatprep.subr.mxu0 0.0
    %1604 = vmatpush1.msra.mxu0 0.0
    %1605 = vmatprep.subr.mxu0 0.0
    %1606 = vmatpush1.msra.mxu0 0.0
    %1607 = vmatprep.subr.mxu0 0.0
    %1608 = vmatpush1.msra.mxu0 0.0
    %1609 = vmatprep.subr.mxu0 0.0
    %1610 = vmatpush1.msra.mxu0 0.0
    %1611 = vmatprep.subr.mxu0 0.0
    %1612 = vmatpush1.msra.mxu0 0.0
    %1613 = vmatprep.subr.mxu0 0.0
    %1614 = vmatpush1.msra.mxu0 0.0
    %1615 = vmatprep.subr.mxu0 0.0
    %1616 = vmatpush1.msra.mxu0 0.0
    %1617 = vmatprep.subr.mxu0 0.0
    %1618 = vmatpush1.msra.mxu0 0.0
    %1619 = vmatprep.subr.mxu0 0.0
    %1620 = vmatpush1.msra.mxu0 0.0
    %1621 = vmatprep.subr.mxu0 0.0
    %1622 = vmatpush1.msra.mxu0 0.0
    %1623 = vmatprep.subr.mxu0 0.0
    %1624 = vmatpush1.msra.mxu0 0.0
    %1625 = vmatprep.mubr.f32.mxu0 0.0
    %1626 = vmatmul.mubr.f32.gmra.mrb[0].mxu0 %v1556
    %v1627 = vpop.f32.mrb[0].mxu0
    %v1628 = vadd.f32 0.0, %v1627
    %v1629 = vpop.f32.mrb[0].mxu0
    %1630 = vmatprep.mubr.f32.mxu0 0.0
    %1631 = vmatmul.mubr.f32.gmra.mrb[0].mxu0 %v1559
    %v1632 = vpop.f32.mrb[0].mxu0
    %v1633 = vadd.f32 0.0, %v1632
    %v1634 = vpop.f32.mrb[0].mxu0
    %1635 = vdwg.mxu0
    %v1636 = vxor.u32 %v1628, 2147483648
    %v1637 = vxor.u32 %v1633, 2147483648
    %v1638 = vmul.f32 %v1636, 1.442695
    %v1639 = vpow.pop %v1638
    %v1640 = vmul.f32 %v1637, 1.442695
    %v1641 = vpow.pop %v1640
    %v1642 = vadd.f32 %v1639, 1.0
    %v1643 = vadd.f32 %v1641, 1.0
    %v1644 = vrcp.pop %v1642
    %v1645 = vmul.f32 1.0, %v1644
    %v1646 = vrcp.pop %v1643
    %v1647 = vmul.f32 1.0, %v1646
    %v1648 = vmul.f32 %v1628, %v1645
    %v1649 = vmul.f32 %v1633, %v1647
    %1652 = vrot.lane.b32.xlu0 %v1628, 64
    %v1653 = vpop.permute.xlu0 %1652
    %1654 = vrot.lane.b32.xlu0 %v1633, 64
    %v1655 = vpop.permute.xlu0 %1654
    %v1658 = vmul.f32 %v1648, %v1653
    %v1659 = vmul.f32 %v1649, %v1655
    %v1660 = vld [vmem:[%s6] sm:$0xff]
    %v1661 = vld [vmem:[%s6 + $0x8] sm:$0xff]
    %v1662 = vld [vmem:[%s6 + $0x10] sm:$0xff]
    %v1663 = vld [vmem:[%s6 + $0x18] sm:$0xff]
    %v1664 = vld [vmem:[%s6 + $0x20] sm:$0xff]
    %v1665 = vld [vmem:[%s6 + $0x28] sm:$0xff]
    %v1666 = vld [vmem:[%s6 + $0x30] sm:$0xff]
    %v1667 = vld [vmem:[%s6 + $0x38] sm:$0xff]
    %vm1668 = vcmask 523264
    %v1670 = vsel %vm1668, %v1658, 0
    %v1673 = vsel %vm1668, %v1659, 0
    %1675 = vmatprep.subr.mxu0 0.0
    %1676 = vmatpush1.msra.mxu0 %v1660
    %1677 = vmatprep.subr.mxu0 0.0
    %1678 = vmatpush1.msra.mxu0 %v1661
    %1679 = vmatprep.subr.mxu0 0.0
    %1680 = vmatpush1.msra.mxu0 %v1662
    %1681 = vmatprep.subr.mxu0 0.0
    %1682 = vmatpush1.msra.mxu0 %v1663
    %1683 = vmatprep.subr.mxu0 0.0
    %1684 = vmatpush1.msra.mxu0 %v1664
    %1685 = vmatprep.subr.mxu0 0.0
    %1686 = vmatpush1.msra.mxu0 %v1665
    %1687 = vmatprep.subr.mxu0 0.0
    %1688 = vmatpush1.msra.mxu0 %v1666
    %1689 = vmatprep.subr.mxu0 0.0
    %1690 = vmatpush1.msra.mxu0 %v1667
    %1691 = vmatprep.subr.mxu0 0.0
    %1692 = vmatpush1.msra.mxu0 0.0
    %1693 = vmatprep.subr.mxu0 0.0
    %1694 = vmatpush1.msra.mxu0 0.0
    %1695 = vmatprep.subr.mxu0 0.0
    %1696 = vmatpush1.msra.mxu0 0.0
    %1697 = vmatprep.subr.mxu0 0.0
    %1698 = vmatpush1.msra.mxu0 0.0
    %1699 = vmatprep.subr.mxu0 0.0
    %1700 = vmatpush1.msra.mxu0 0.0
    %1701 = vmatprep.subr.mxu0 0.0
    %1702 = vmatpush1.msra.mxu0 0.0
    %1703 = vmatprep.subr.mxu0 0.0
    %1704 = vmatpush1.msra.mxu0 0.0
    %1705 = vmatprep.subr.mxu0 0.0
    %1706 = vmatpush1.msra.mxu0 0.0
    %1707 = vmatprep.subr.mxu0 0.0
    %1708 = vmatpush1.msra.mxu0 0.0
    %1709 = vmatprep.subr.mxu0 0.0
    %1710 = vmatpush1.msra.mxu0 0.0
    %1711 = vmatprep.subr.mxu0 0.0
    %1712 = vmatpush1.msra.mxu0 0.0
    %1713 = vmatprep.subr.mxu0 0.0
    %1714 = vmatpush1.msra.mxu0 0.0
    %1715 = vmatprep.subr.mxu0 0.0
    %1716 = vmatpush1.msra.mxu0 0.0
    %1717 = vmatprep.subr.mxu0 0.0
    %1718 = vmatpush1.msra.mxu0 0.0
    %1719 = vmatprep.subr.mxu0 0.0
    %1720 = vmatpush1.msra.mxu0 0.0
    %1721 = vmatprep.subr.mxu0 0.0
    %1722 = vmatpush1.msra.mxu0 0.0
    %1723 = vmatprep.subr.mxu0 0.0
    %1724 = vmatpush1.msra.mxu0 0.0
    %1725 = vmatprep.subr.mxu0 0.0
    %1726 = vmatpush1.msra.mxu0 0.0
    %1727 = vmatprep.subr.mxu0 0.0
    %1728 = vmatpush1.msra.mxu0 0.0
    %1729 = vmatprep.subr.mxu0 0.0
    %1730 = vmatpush1.msra.mxu0 0.0
    %1731 = vmatprep.subr.mxu0 0.0
    %1732 = vmatpush1.msra.mxu0 0.0
    %1733 = vmatprep.subr.mxu0 0.0
    %1734 = vmatpush1.msra.mxu0 0.0
    %1735 = vmatprep.subr.mxu0 0.0
    %1736 = vmatpush1.msra.mxu0 0.0
    %1737 = vmatprep.subr.mxu0 0.0
    %1738 = vmatpush1.msra.mxu0 0.0
    %1739 = vmatprep.mubr.f32.mxu0 0.0
    %1740 = vmatmul.mubr.f32.gmra.mrb[0].mxu0 %v1670
    %v1741 = vpop.f32.mrb[0].mxu0
    %v1742 = vadd.f32 0.0, %v1741
    %v1743 = vpop.f32.mrb[0].mxu0
    %1744 = vmatprep.mubr.f32.mxu0 0.0
    %1745 = vmatmul.mubr.f32.gmra.mrb[0].mxu0 %v1673
    %v1746 = vpop.f32.mrb[0].mxu0
    %v1747 = vadd.f32 0.0, %v1746
    %v1748 = vpop.f32.mrb[0].mxu0
    %1749 = vdwg.mxu0
    %v1750 = vadd.f32 %v1524, %v1742
    %v1751 = vadd.f32 %v1525, %v1747
    %1752 = vst.msk [vmem:[#allocation5] sm:$0xff] %vm65, %v1750
    %1753 = vst.msk [vmem:[#allocation5 + $0x8] sm:$0xff] %vm65, %v1751
    // Predicated region
    $region46: #{tpu_custom_call.1} parent=1 // pred_check
      _
    $region47: #{tpu_custom_call.1} parent=1 // pred_check_branch
      %1755 = sbr.rel (0) target = $region49
    $region48: #{tpu_custom_call.1} parent=1 // pred_region
      %s1757 = ssub.s32 256, 256
      %1758 = vsyncadd [#allocation4], %s1757
      %s1759 = sshll.u32 [#allocation5], 4
      %s1760 = int_to_ptr.vmem [resolvable:$true] %s1759
      %1765 = dma.vmem_to_hbm [thread:$0]  %s1760, 256, %s10, [#allocation4], 128, 128, 8
    $region49: #{tpu_custom_call.1} parent=1 // pred_fallthru
      _
    // Predicated region
    $region50: #{tpu_custom_call.1} parent=1 // pred_check
      _
    $region51: #{tpu_custom_call.1} parent=1 // pred_check_branch
      %1767 = sbr.rel (0) target = $region53
    $region52: #{tpu_custom_call.1} parent=1 // pred_region
      %1768 = dma.done [#allocation4], 256
    $region53: #{tpu_custom_call.1} parent=1 // pred_fallthru
      _
    %1769 = vsyncpa [#allocation3], 1
    %1770 = vsyncpa [#allocation4], 1

</llo_original>
